<compile_context>
chip_gen: v6e
topology: v6e:2x2x1
jax: 0.10.0
libtpu: 0.0.40
codegen_flags: <defaults>
</compile_context>

<pallas_src>
import functools

import jax
import jax.numpy as jnp
from jax.experimental import pallas as pl
from jax.experimental.pallas import tpu as pltpu

LANE = 128  # TPU vreg lane width; output last dim is padded to this.


def _round_up(n, m):
    return ((n + m - 1) // m) * m


def _linear_kernel(x_ref, w_ref, b_ref, o_ref):
    # MXU matmul with exact-f32 precision and f32 accumulation; bias add on
    # the VPU; lane-dense (128-wide) unmasked store.
    acc = jnp.dot(
        x_ref[...],
        w_ref[...],
        preferred_element_type=jnp.float32,
        precision=jax.lax.Precision.HIGHEST,
    )
    o_ref[...] = (acc + b_ref[...]).astype(o_ref.dtype)


def pad_linear_params(w, b):
    """Pad nn.Linear params to a lane-dense output dim ONCE (hoisted from fwd).

    w: (input_size, target_size)  -- transpose of PyTorch fc1.weight
    b: (target_size,) or (1, target_size)
    Returns (w_p, b_p, target_size); w_p: (D, C_pad), b_p: (1, C_pad),
    padded lanes are exactly zero.
    """
    D, C = w.shape
    b = jnp.asarray(b).reshape(1, C)
    C_pad = _round_up(C, LANE)
    w_p = jnp.zeros((D, C_pad), w.dtype).at[:, :C].set(w)
    b_p = jnp.zeros((1, C_pad), b.dtype).at[:, :C].set(b)
    return w_p, b_p, C


def _cost(B, D, C_pad, itemsize):
    return pl.CostEstimate(
        flops=2 * B * D * C_pad,
        bytes_accessed=(B * D + D * C_pad + C_pad + B * C_pad) * itemsize,
        transcendentals=0,
    )


@functools.partial(jax.jit, static_argnums=(3,), static_argnames=("batch_tile",))
def mlp_forward(x, w_p, b_p, num_classes, *, batch_tile=1024):
    """y = x @ W + b (PyTorch nn.Linear forward) via Pallas.

    x:   (B, input_size) f32
    w_p: (input_size, C_pad) f32, lane-padded (from pad_linear_params)
    b_p: (1, C_pad) f32, lane-padded
    num_classes: true output width (e.g. 3); padded lanes are sliced off.
    """
    B, D = x.shape
    Dw, C_pad = w_p.shape
    assert Dw == D and C_pad % LANE == 0
    itemsize = jnp.dtype(x.dtype).itemsize

    if B <= batch_tile:
        # Small/latency path: everything VMEM-resident, single invocation,
        # no grid / pipeline bookkeeping.
        out = pl.pallas_call(
            _linear_kernel,
            out_shape=jax.ShapeDtypeStruct((B, C_pad), x.dtype),
            in_specs=[
                pl.BlockSpec(memory_space=pltpu.MemorySpace.VMEM),
                pl.BlockSpec(memory_space=pltpu.MemorySpace.VMEM),
                pl.BlockSpec(memory_space=pltpu.MemorySpace.VMEM),
            ],
            out_specs=pl.BlockSpec(memory_space=pltpu.MemorySpace.VMEM),
            cost_estimate=_cost(B, D, C_pad, itemsize),
        )(x, w_p, b_p)
        # Consumers that can take the padded (B, 128) output should do so to
        # avoid materializing this slice; we keep nn.Linear's (B, 3) contract.
        return out[:, :num_classes]

    # Large-batch path: tile the batch axis; x/out DMAs double-buffer and
    # overlap the matmul; w/b pinned to block (0,0) stay VMEM-resident.
    # Ragged grid (no zero-pad copy of x): last block's OOB rows are masked
    # on store, and each output row depends only on its own x row.
    TB = batch_tile
    out = pl.pallas_call(
        _linear_kernel,
        out_shape=jax.ShapeDtypeStruct((B, C_pad), x.dtype),
        grid=(pl.cdiv(B, TB),),
        in_specs=[
            pl.BlockSpec((TB, D), lambda i: (i, 0)),
            pl.BlockSpec((D, C_pad), lambda i: (0, 0)),
            pl.BlockSpec((1, C_pad), lambda i: (0, 0)),
        ],
        out_specs=pl.BlockSpec((TB, C_pad), lambda i: (i, 0)),
        compiler_params=pltpu.CompilerParams(
            # Batch tiles are independent -> 2-TC sharding on v7x, harmless
            # elsewhere.  Explicit VMEM limit: v5e's scoped default is only
            # 16 MiB; 32 MiB covers batch_tile up to ~2048 f32 and stays well
            # under v7x's 64 MiB physical VMEM.
            dimension_semantics=("parallel",),
            vmem_limit_bytes=32 << 20,
        ),
        cost_estimate=_cost(B, D, C_pad, itemsize),
    )(x, w_p, b_p)
    return out[:, :num_classes]


def init_mlp_params(key, input_size=768, target_size=3, dtype=jnp.float32):
    # Mirrors nn.Linear default init: U(-1/sqrt(fan_in), 1/sqrt(fan_in)).
    kw, kb = jax.random.split(key)
    bound = 1.0 / (input_size ** 0.5)
    # PyTorch fc1.weight is (target_size, input_size); keep its transpose
    # (input_size, target_size) so the kernel computes x @ W directly.
    w = jax.random.uniform(kw, (input_size, target_size), dtype,
                           minval=-bound, maxval=bound)
    b = jax.random.uniform(kb, (1, target_size), dtype,
                           minval=-bound, maxval=bound)
    return w, b


if __name__ == "__main__":
    key = jax.random.PRNGKey(0)
    k_x, k_p, k_x2 = jax.random.split(key, 3)

    input_size = 768
    target_size = 3
    w, b = init_mlp_params(k_p, input_size=input_size, target_size=target_size)
    # Pad once at init (hoisted out of the forward path).
    w_p, b_p, C = pad_linear_params(w, b)

    # --- Small-batch / latency path (no grid, whole arrays in VMEM) ---
    batch = 8
    x = jax.random.normal(k_x, (batch, input_size), dtype=jnp.float32)
    y = mlp_forward(x, w_p, b_p, C)
    jax.block_until_ready(y)
    y_ref = x @ w + b
    assert y.shape == (batch, target_size)
    assert jnp.allclose(y, y_ref, atol=1e-4, rtol=1e-4)

    # --- Batch-tiled path, ragged final block (no x zero-pad copy) ---
    big_batch = 600          # 600 = 2*256 + 88 -> exercises the masked tail
    x2 = jax.random.normal(k_x2, (big_batch, input_size), dtype=jnp.float32)
    y2 = mlp_forward(x2, w_p, b_p, C, batch_tile=256)
    jax.block_until_ready(y2)
    y2_ref = x2 @ w + b
    assert y2.shape == (big_batch, target_size)
    assert jnp.allclose(y2, y2_ref, atol=1e-4, rtol=1e-4)

    print("KERNEL_OK")
</pallas_src>

<mosaic_0001>
module attributes {stable_mosaic.version = 11 : i64} {
  func.func @_linear_kernel(%arg0: memref<8x768xf32, #tpu.memory_space<vmem>>, %arg1: memref<768x128xf32, #tpu.memory_space<vmem>>, %arg2: memref<1x128xf32, #tpu.memory_space<vmem>>, %arg3: memref<8x128xf32, #tpu.memory_space<vmem>>) attributes {dimension_semantics = [], scalar_prefetch = 0 : i64, scratch_operands = 0 : i64, tpu.core_type = #tpu.core_type<tc>} {
    %c0 = arith.constant 0 : index
    %c0_0 = arith.constant 0 : index
    %0 = vector.load %arg0[%c0, %c0_0] : memref<8x768xf32, #tpu.memory_space<vmem>>, vector<8x768xf32>
    %c0_1 = arith.constant 0 : index
    %c0_2 = arith.constant 0 : index
    %1 = vector.load %arg1[%c0_1, %c0_2] : memref<768x128xf32, #tpu.memory_space<vmem>>, vector<768x128xf32>
    %cst = arith.constant dense<0.000000e+00> : vector<8x128xf32>
    %2 = tpu.matmul %0, %1, %cst {dimension_numbers = #tpu.dot_dimension_numbers<[1], [0], [0], [1], [0, 0, 1, 1], [], []>, precision = #tpu.contract_precision<fp32>} : vector<8x768xf32>, vector<768x128xf32>, vector<8x128xf32> -> vector<8x128xf32>
    %c0_3 = arith.constant 0 : index
    %c0_4 = arith.constant 0 : index
    %3 = vector.load %arg2[%c0_3, %c0_4] : memref<1x128xf32, #tpu.memory_space<vmem>>, vector<1x128xf32>
    %4 = vector.broadcast %3 : vector<1x128xf32> to vector<8x128xf32>
    %5 = arith.addf %2, %4 : vector<8x128xf32>
    %c0_5 = arith.constant 0 : index
    %c0_6 = arith.constant 0 : index
    %6 = vector.load %arg3[%c0_5, %c0_6] : memref<8x128xf32, #tpu.memory_space<vmem>>, vector<8x128xf32>
    tpu.vector_store %arg3[%c0_5, %c0_6], %5 {strides = array<i32>} : memref<8x128xf32, #tpu.memory_space<vmem>>, vector<8x128xf32>,
    return
  }
}

</mosaic_0001>

<llo_original>
// kernel: mlp_forward.1
$region0: #{mlp_forward.1}
  #allocation0 [shape = 'u32[]', space=smem, size = 0x4, offset = 0x4, fixed_abs, tag = 'smem constant byte address 0x4 - core index']
  #allocation1 [shape = 'u32[144,128]{1,0:T(1,128)}', space=vmem, size = 0x12000, scoped, tag = 'internal scratch']
  %s0 = inlined_call_operand.hbm [shape: f32[8,768], index: 0, kind: input, shape index: {}]
  %s1 = inlined_call_operand.hbm [shape: f32[768,128], index: 1, kind: input, shape index: {}]
  %s2 = inlined_call_operand.vmem [shape: f32[1,128], index: 2, kind: input, shape index: {}]
  %s3 = inlined_call_operand.vmem [shape: f32[8,128], index: 3, kind: output, shape index: {}]
  %s4 = sld [smem:[#allocation0]]
  $region30: #{mlp_forward.1} parent=0
    _
  %s6 = ssub.s32 1, %s4
  %s7 = scalar_select 0, %s6, %s4
  $region1: #{mlp_forward.1} parent=0
    #allocation2 [shape = 'u8[24576]{0}', space=vmem, size = 0x6000, scoped, tag = 'input window, operand 0, single buffered']
    #allocation3 [shape = 's32[1]{0}', space=sflag, size = 0x4, scoped, tag = 'scoped memory for mlp_forward.1']
    #allocation4 [shape = 'u8[393216]{0}', space=vmem, size = 0x60000, scoped, tag = 'input window, operand 1, single buffered']
    #allocation5 [shape = 's32[1]{0}', space=sflag, size = 0x4, scoped, tag = 'scoped memory for mlp_forward.1']
    %8 = vsyncpa [#allocation3], 0
    %9 = vsyncpa [#allocation5], 0
    // Predicated region
    $region2: #{mlp_forward.1} parent=1 // pred_check
      _
    $region3: #{mlp_forward.1} parent=1 // pred_check_branch
      %11 = sbr.rel (0) target = $region5
    $region4: #{mlp_forward.1} parent=1 // pred_region
      %s13 = ssub.s32 768, 768
      %14 = vsyncadd [#allocation3], %s13
      %s16 = sshll.u32 [#allocation2], 4
      %s17 = int_to_ptr.vmem [resolvable:$true] %s16
      %19 = dma.hbm_to_vmem [thread:$0]  %s0, 768, %s17, [#allocation3]
    $region5: #{mlp_forward.1} parent=1 // pred_fallthru
      _
    // Predicated region
    $region6: #{mlp_forward.1} parent=1 // pred_check
      _
    $region7: #{mlp_forward.1} parent=1 // pred_check_branch
      %21 = sbr.rel (0) target = $region9
    $region8: #{mlp_forward.1} parent=1 // pred_region
      %s23 = ssub.s32 12288, 12288
      %24 = vsyncadd [#allocation5], %s23
      %s25 = sshll.u32 [#allocation4], 4
      %s26 = int_to_ptr.vmem [resolvable:$true] %s25
      %31 = dma.hbm_to_vmem [thread:$0]  %s1, 12288, %s26, [#allocation5], 128, 128, 8
    $region9: #{mlp_forward.1} parent=1 // pred_fallthru
      _
    // Predicated region
    $region10: #{mlp_forward.1} parent=1 // pred_check
      _
    $region11: #{mlp_forward.1} parent=1 // pred_check_branch
      %33 = sbr.rel (0) target = $region13
    $region12: #{mlp_forward.1} parent=1 // pred_region
      _
    $region13: #{mlp_forward.1} parent=1 // pred_fallthru
      _
    // Predicated region
    $region14: #{mlp_forward.1} parent=1 // pred_check
      _
    $region15: #{mlp_forward.1} parent=1 // pred_check_branch
      %35 = sbr.rel (0) target = $region17
    $region16: #{mlp_forward.1} parent=1 // pred_region
      %36 = dma.done [#allocation3], 768
    $region17: #{mlp_forward.1} parent=1 // pred_fallthru
      _
    // Predicated region
    $region18: #{mlp_forward.1} parent=1 // pred_check
      _
    $region19: #{mlp_forward.1} parent=1 // pred_check_branch
      %38 = sbr.rel (0) target = $region21
    $region20: #{mlp_forward.1} parent=1 // pred_region
      %39 = dma.done [#allocation5], 12288
    $region21: #{mlp_forward.1} parent=1 // pred_fallthru
      _
    %v40 = vld [vmem:[#allocation2] sm:$0xff]
    %v41 = vld [vmem:[#allocation2 + $0x8] sm:$0xff]
    %v42 = vld [vmem:[#allocation2 + $0x10] sm:$0xff]
    %v43 = vld [vmem:[#allocation2 + $0x18] sm:$0xff]
    %v44 = vld [vmem:[#allocation2 + $0x20] sm:$0xff]
    %v45 = vld [vmem:[#allocation2 + $0x28] sm:$0xff]
    %v46 = vld [vmem:[#allocation4] sm:$0xff]
    %v47 = vld [vmem:[#allocation4 + $0x8] sm:$0xff]
    %v48 = vld [vmem:[#allocation4 + $0x10] sm:$0xff]
    %v49 = vld [vmem:[#allocation4 + $0x18] sm:$0xff]
    %v50 = vld [vmem:[#allocation4 + $0x20] sm:$0xff]
    %v51 = vld [vmem:[#allocation4 + $0x28] sm:$0xff]
    %v52 = vld [vmem:[#allocation4 + $0x30] sm:$0xff]
    %v53 = vld [vmem:[#allocation4 + $0x38] sm:$0xff]
    %v54 = vld [vmem:[#allocation4 + $0x40] sm:$0xff]
    %v55 = vld [vmem:[#allocation4 + $0x48] sm:$0xff]
    %v56 = vld [vmem:[#allocation4 + $0x50] sm:$0xff]
    %v57 = vld [vmem:[#allocation4 + $0x58] sm:$0xff]
    %v58 = vld [vmem:[#allocation4 + $0x60] sm:$0xff]
    %v59 = vld [vmem:[#allocation4 + $0x68] sm:$0xff]
    %v60 = vld [vmem:[#allocation4 + $0x70] sm:$0xff]
    %v61 = vld [vmem:[#allocation4 + $0x78] sm:$0xff]
    %v62 = vld [vmem:[#allocation4 + $0x80] sm:$0xff]
    %v63 = vld [vmem:[#allocation4 + $0x88] sm:$0xff]
    %v64 = vld [vmem:[#allocation4 + $0x90] sm:$0xff]
    %v65 = vld [vmem:[#allocation4 + $0x98] sm:$0xff]
    %v66 = vld [vmem:[#allocation4 + $0xa0] sm:$0xff]
    %v67 = vld [vmem:[#allocation4 + $0xa8] sm:$0xff]
    %v68 = vld [vmem:[#allocation4 + $0xb0] sm:$0xff]
    %v69 = vld [vmem:[#allocation4 + $0xb8] sm:$0xff]
    %v70 = vld [vmem:[#allocation4 + $0xc0] sm:$0xff]
    %v71 = vld [vmem:[#allocation4 + $0xc8] sm:$0xff]
    %v72 = vld [vmem:[#allocation4 + $0xd0] sm:$0xff]
    %v73 = vld [vmem:[#allocation4 + $0xd8] sm:$0xff]
    %v74 = vld [vmem:[#allocation4 + $0xe0] sm:$0xff]
    %v75 = vld [vmem:[#allocation4 + $0xe8] sm:$0xff]
    %v76 = vld [vmem:[#allocation4 + $0xf0] sm:$0xff]
    %v77 = vld [vmem:[#allocation4 + $0xf8] sm:$0xff]
    %v78 = vld [vmem:[#allocation4 + $0x100] sm:$0xff]
    %v79 = vld [vmem:[#allocation4 + $0x108] sm:$0xff]
    %v80 = vld [vmem:[#allocation4 + $0x110] sm:$0xff]
    %v81 = vld [vmem:[#allocation4 + $0x118] sm:$0xff]
    %v82 = vld [vmem:[#allocation4 + $0x120] sm:$0xff]
    %v83 = vld [vmem:[#allocation4 + $0x128] sm:$0xff]
    %v84 = vld [vmem:[#allocation4 + $0x130] sm:$0xff]
    %v85 = vld [vmem:[#allocation4 + $0x138] sm:$0xff]
    %v86 = vld [vmem:[#allocation4 + $0x140] sm:$0xff]
    %v87 = vld [vmem:[#allocation4 + $0x148] sm:$0xff]
    %v88 = vld [vmem:[#allocation4 + $0x150] sm:$0xff]
    %v89 = vld [vmem:[#allocation4 + $0x158] sm:$0xff]
    %v90 = vld [vmem:[#allocation4 + $0x160] sm:$0xff]
    %v91 = vld [vmem:[#allocation4 + $0x168] sm:$0xff]
    %v92 = vld [vmem:[#allocation4 + $0x170] sm:$0xff]
    %v93 = vld [vmem:[#allocation4 + $0x178] sm:$0xff]
    %v94 = vld [vmem:[#allocation4 + $0x180] sm:$0xff]
    %v95 = vld [vmem:[#allocation4 + $0x188] sm:$0xff]
    %v96 = vld [vmem:[#allocation4 + $0x190] sm:$0xff]
    %v97 = vld [vmem:[#allocation4 + $0x198] sm:$0xff]
    %v98 = vld [vmem:[#allocation4 + $0x1a0] sm:$0xff]
    %v99 = vld [vmem:[#allocation4 + $0x1a8] sm:$0xff]
    %v100 = vld [vmem:[#allocation4 + $0x1b0] sm:$0xff]
    %v101 = vld [vmem:[#allocation4 + $0x1b8] sm:$0xff]
    %v102 = vld [vmem:[#allocation4 + $0x1c0] sm:$0xff]
    %v103 = vld [vmem:[#allocation4 + $0x1c8] sm:$0xff]
    %v104 = vld [vmem:[#allocation4 + $0x1d0] sm:$0xff]
    %v105 = vld [vmem:[#allocation4 + $0x1d8] sm:$0xff]
    %v106 = vld [vmem:[#allocation4 + $0x1e0] sm:$0xff]
    %v107 = vld [vmem:[#allocation4 + $0x1e8] sm:$0xff]
    %v108 = vld [vmem:[#allocation4 + $0x1f0] sm:$0xff]
    %v109 = vld [vmem:[#allocation4 + $0x1f8] sm:$0xff]
    %v110 = vld [vmem:[#allocation4 + $0x200] sm:$0xff]
    %v111 = vld [vmem:[#allocation4 + $0x208] sm:$0xff]
    %v112 = vld [vmem:[#allocation4 + $0x210] sm:$0xff]
    %v113 = vld [vmem:[#allocation4 + $0x218] sm:$0xff]
    %v114 = vld [vmem:[#allocation4 + $0x220] sm:$0xff]
    %v115 = vld [vmem:[#allocation4 + $0x228] sm:$0xff]
    %v116 = vld [vmem:[#allocation4 + $0x230] sm:$0xff]
    %v117 = vld [vmem:[#allocation4 + $0x238] sm:$0xff]
    %v118 = vld [vmem:[#allocation4 + $0x240] sm:$0xff]
    %v119 = vld [vmem:[#allocation4 + $0x248] sm:$0xff]
    %v120 = vld [vmem:[#allocation4 + $0x250] sm:$0xff]
    %v121 = vld [vmem:[#allocation4 + $0x258] sm:$0xff]
    %v122 = vld [vmem:[#allocation4 + $0x260] sm:$0xff]
    %v123 = vld [vmem:[#allocation4 + $0x268] sm:$0xff]
    %v124 = vld [vmem:[#allocation4 + $0x270] sm:$0xff]
    %v125 = vld [vmem:[#allocation4 + $0x278] sm:$0xff]
    %v126 = vld [vmem:[#allocation4 + $0x280] sm:$0xff]
    %v127 = vld [vmem:[#allocation4 + $0x288] sm:$0xff]
    %v128 = vld [vmem:[#allocation4 + $0x290] sm:$0xff]
    %v129 = vld [vmem:[#allocation4 + $0x298] sm:$0xff]
    %v130 = vld [vmem:[#allocation4 + $0x2a0] sm:$0xff]
    %v131 = vld [vmem:[#allocation4 + $0x2a8] sm:$0xff]
    %v132 = vld [vmem:[#allocation4 + $0x2b0] sm:$0xff]
    %v133 = vld [vmem:[#allocation4 + $0x2b8] sm:$0xff]
    %v134 = vld [vmem:[#allocation4 + $0x2c0] sm:$0xff]
    %v135 = vld [vmem:[#allocation4 + $0x2c8] sm:$0xff]
    %v136 = vld [vmem:[#allocation4 + $0x2d0] sm:$0xff]
    %v137 = vld [vmem:[#allocation4 + $0x2d8] sm:$0xff]
    %v138 = vld [vmem:[#allocation4 + $0x2e0] sm:$0xff]
    %v139 = vld [vmem:[#allocation4 + $0x2e8] sm:$0xff]
    %v140 = vld [vmem:[#allocation4 + $0x2f0] sm:$0xff]
    %v141 = vld [vmem:[#allocation4 + $0x2f8] sm:$0xff]
    %v142 = vld [vmem:[%s2] sm:$0x1]
    %v144 = vlaneseq
    %v145 = vshrl.u32 %v144, 7
    %v146 = vsub.s32 0, %v145
    %v147 = vrot.slane %v142, %v146
    %149 = vmatprep.subr.mxu0 0.0
    %v150 = vand.u32 %v61, 4294901760
    %151 = vmatpush1.msra.mxu0 %v150
    %152 = vmatprep.subr.mxu0 0.0
    %v153 = vand.u32 %v60, 4294901760
    %154 = vmatpush1.msra.mxu0 %v153
    %155 = vmatprep.subr.mxu0 0.0
    %v156 = vand.u32 %v59, 4294901760
    %157 = vmatpush1.msra.mxu0 %v156
    %158 = vmatprep.subr.mxu0 0.0
    %v159 = vand.u32 %v58, 4294901760
    %160 = vmatpush1.msra.mxu0 %v159
    %161 = vmatprep.subr.mxu0 0.0
    %v162 = vand.u32 %v57, 4294901760
    %163 = vmatpush1.msra.mxu0 %v162
    %164 = vmatprep.subr.mxu0 0.0
    %v165 = vand.u32 %v56, 4294901760
    %166 = vmatpush1.msra.mxu0 %v165
    %167 = vmatprep.subr.mxu0 0.0
    %v168 = vand.u32 %v55, 4294901760
    %169 = vmatpush1.msra.mxu0 %v168
    %170 = vmatprep.subr.mxu0 0.0
    %v171 = vand.u32 %v54, 4294901760
    %172 = vmatpush1.msra.mxu0 %v171
    %173 = vmatprep.subr.mxu0 0.0
    %v174 = vand.u32 %v53, 4294901760
    %175 = vmatpush1.msra.mxu0 %v174
    %176 = vmatprep.subr.mxu0 0.0
    %v177 = vand.u32 %v52, 4294901760
    %178 = vmatpush1.msra.mxu0 %v177
    %179 = vmatprep.subr.mxu0 0.0
    %v180 = vand.u32 %v51, 4294901760
    %181 = vmatpush1.msra.mxu0 %v180
    %182 = vmatprep.subr.mxu0 0.0
    %v183 = vand.u32 %v50, 4294901760
    %184 = vmatpush1.msra.mxu0 %v183
    %185 = vmatprep.subr.mxu0 0.0
    %v186 = vand.u32 %v49, 4294901760
    %187 = vmatpush1.msra.mxu0 %v186
    %188 = vmatprep.subr.mxu0 0.0
    %v189 = vand.u32 %v48, 4294901760
    %190 = vmatpush1.msra.mxu0 %v189
    %191 = vmatprep.subr.mxu0 0.0
    %v192 = vand.u32 %v47, 4294901760
    %193 = vmatpush1.msra.mxu0 %v192
    %194 = vmatprep.subr.mxu0 0.0
    %v195 = vand.u32 %v46, 4294901760
    %196 = vmatpush1.msra.mxu0 %v195
    %197 = vmatprep.subr.mxu0 0.0
    %v198 = vand.u32 %v77, 4294901760
    %199 = vmatpush2.msra.mxu0 %v198
    %200 = vmatprep.subr.mxu0 0.0
    %v201 = vand.u32 %v76, 4294901760
    %202 = vmatpush2.msra.mxu0 %v201
    %203 = vmatprep.subr.mxu0 0.0
    %v204 = vand.u32 %v75, 4294901760
    %205 = vmatpush2.msra.mxu0 %v204
    %206 = vmatprep.subr.mxu0 0.0
    %v207 = vand.u32 %v74, 4294901760
    %208 = vmatpush2.msra.mxu0 %v207
    %209 = vmatprep.subr.mxu0 0.0
    %v210 = vand.u32 %v73, 4294901760
    %211 = vmatpush2.msra.mxu0 %v210
    %212 = vmatprep.subr.mxu0 0.0
    %v213 = vand.u32 %v72, 4294901760
    %214 = vmatpush2.msra.mxu0 %v213
    %215 = vmatprep.subr.mxu0 0.0
    %v216 = vand.u32 %v71, 4294901760
    %217 = vmatpush2.msra.mxu0 %v216
    %218 = vmatprep.subr.mxu0 0.0
    %v219 = vand.u32 %v70, 4294901760
    %220 = vmatpush2.msra.mxu0 %v219
    %221 = vmatprep.subr.mxu0 0.0
    %v222 = vand.u32 %v69, 4294901760
    %223 = vmatpush2.msra.mxu0 %v222
    %224 = vmatprep.subr.mxu0 0.0
    %v225 = vand.u32 %v68, 4294901760
    %226 = vmatpush2.msra.mxu0 %v225
    %227 = vmatprep.subr.mxu0 0.0
    %v228 = vand.u32 %v67, 4294901760
    %229 = vmatpush2.msra.mxu0 %v228
    %230 = vmatprep.subr.mxu0 0.0
    %v231 = vand.u32 %v66, 4294901760
    %232 = vmatpush2.msra.mxu0 %v231
    %233 = vmatprep.subr.mxu0 0.0
    %v234 = vand.u32 %v65, 4294901760
    %235 = vmatpush2.msra.mxu0 %v234
    %236 = vmatprep.subr.mxu0 0.0
    %v237 = vand.u32 %v64, 4294901760
    %238 = vmatpush2.msra.mxu0 %v237
    %239 = vmatprep.subr.mxu0 0.0
    %v240 = vand.u32 %v63, 4294901760
    %241 = vmatpush2.msra.mxu0 %v240
    %242 = vmatprep.subr.mxu0 0.0
    %v243 = vand.u32 %v62, 4294901760
    %244 = vmatpush2.msra.mxu0 %v243
    %v245 = vand.u32 %v41, 4294901760
    %v246 = vsub.f32 %v41, %v245
    %v247 = vand.u32 %v246, 4294901760
    %v248 = vsub.f32 %v246, %v247
    %v249 = vand.u32 %v248, 4294901760
    %250 = vmatprep.mubr.f32.mxu0 %v249
    %v251 = vand.u32 %v40, 4294901760
    %v252 = vsub.f32 %v40, %v251
    %v253 = vand.u32 %v252, 4294901760
    %v254 = vsub.f32 %v252, %v253
    %v255 = vand.u32 %v254, 4294901760
    %256 = vmatmul.mubr.f32.gmra.mxu0 %v255
    %v257 = vpop.f32.mrf.mxu0
    %v258 = vadd.f32 %v147, %v257
    %v259 = vpop.f32.mrf.mxu0
    %260 = vdwg.mxu0
    %261 = vmatprep.subr.mxu0 0.0
    %v262 = vand.u32 %v61, 4294901760
    %v263 = vsub.f32 %v61, %v262
    %v264 = vand.u32 %v263, 4294901760
    %v265 = vsub.f32 %v263, %v264
    %v266 = vand.u32 %v265, 4294901760
    %267 = vmatpush1.msra.mxu0 %v266
    %268 = vmatprep.subr.mxu0 0.0
    %v269 = vand.u32 %v60, 4294901760
    %v270 = vsub.f32 %v60, %v269
    %v271 = vand.u32 %v270, 4294901760
    %v272 = vsub.f32 %v270, %v271
    %v273 = vand.u32 %v272, 4294901760
    %274 = vmatpush1.msra.mxu0 %v273
    %275 = vmatprep.subr.mxu0 0.0
    %v276 = vand.u32 %v59, 4294901760
    %v277 = vsub.f32 %v59, %v276
    %v278 = vand.u32 %v277, 4294901760
    %v279 = vsub.f32 %v277, %v278
    %v280 = vand.u32 %v279, 4294901760
    %281 = vmatpush1.msra.mxu0 %v280
    %282 = vmatprep.subr.mxu0 0.0
    %v283 = vand.u32 %v58, 4294901760
    %v284 = vsub.f32 %v58, %v283
    %v285 = vand.u32 %v284, 4294901760
    %v286 = vsub.f32 %v284, %v285
    %v287 = vand.u32 %v286, 4294901760
    %288 = vmatpush1.msra.mxu0 %v287
    %289 = vmatprep.subr.mxu0 0.0
    %v290 = vand.u32 %v57, 4294901760
    %v291 = vsub.f32 %v57, %v290
    %v292 = vand.u32 %v291, 4294901760
    %v293 = vsub.f32 %v291, %v292
    %v294 = vand.u32 %v293, 4294901760
    %295 = vmatpush1.msra.mxu0 %v294
    %296 = vmatprep.subr.mxu0 0.0
    %v297 = vand.u32 %v56, 4294901760
    %v298 = vsub.f32 %v56, %v297
    %v299 = vand.u32 %v298, 4294901760
    %v300 = vsub.f32 %v298, %v299
    %v301 = vand.u32 %v300, 4294901760
    %302 = vmatpush1.msra.mxu0 %v301
    %303 = vmatprep.subr.mxu0 0.0
    %v304 = vand.u32 %v55, 4294901760
    %v305 = vsub.f32 %v55, %v304
    %v306 = vand.u32 %v305, 4294901760
    %v307 = vsub.f32 %v305, %v306
    %v308 = vand.u32 %v307, 4294901760
    %309 = vmatpush1.msra.mxu0 %v308
    %310 = vmatprep.subr.mxu0 0.0
    %v311 = vand.u32 %v54, 4294901760
    %v312 = vsub.f32 %v54, %v311
    %v313 = vand.u32 %v312, 4294901760
    %v314 = vsub.f32 %v312, %v313
    %v315 = vand.u32 %v314, 4294901760
    %316 = vmatpush1.msra.mxu0 %v315
    %317 = vmatprep.subr.mxu0 0.0
    %v318 = vand.u32 %v53, 4294901760
    %v319 = vsub.f32 %v53, %v318
    %v320 = vand.u32 %v319, 4294901760
    %v321 = vsub.f32 %v319, %v320
    %v322 = vand.u32 %v321, 4294901760
    %323 = vmatpush1.msra.mxu0 %v322
    %324 = vmatprep.subr.mxu0 0.0
    %v325 = vand.u32 %v52, 4294901760
    %v326 = vsub.f32 %v52, %v325
    %v327 = vand.u32 %v326, 4294901760
    %v328 = vsub.f32 %v326, %v327
    %v329 = vand.u32 %v328, 4294901760
    %330 = vmatpush1.msra.mxu0 %v329
    %331 = vmatprep.subr.mxu0 0.0
    %v332 = vand.u32 %v51, 4294901760
    %v333 = vsub.f32 %v51, %v332
    %v334 = vand.u32 %v333, 4294901760
    %v335 = vsub.f32 %v333, %v334
    %v336 = vand.u32 %v335, 4294901760
    %337 = vmatpush1.msra.mxu0 %v336
    %338 = vmatprep.subr.mxu0 0.0
    %v339 = vand.u32 %v50, 4294901760
    %v340 = vsub.f32 %v50, %v339
    %v341 = vand.u32 %v340, 4294901760
    %v342 = vsub.f32 %v340, %v341
    %v343 = vand.u32 %v342, 4294901760
    %344 = vmatpush1.msra.mxu0 %v343
    %345 = vmatprep.subr.mxu0 0.0
    %v346 = vand.u32 %v49, 4294901760
    %v347 = vsub.f32 %v49, %v346
    %v348 = vand.u32 %v347, 4294901760
    %v349 = vsub.f32 %v347, %v348
    %v350 = vand.u32 %v349, 4294901760
    %351 = vmatpush1.msra.mxu0 %v350
    %352 = vmatprep.subr.mxu0 0.0
    %v353 = vand.u32 %v48, 4294901760
    %v354 = vsub.f32 %v48, %v353
    %v355 = vand.u32 %v354, 4294901760
    %v356 = vsub.f32 %v354, %v355
    %v357 = vand.u32 %v356, 4294901760
    %358 = vmatpush1.msra.mxu0 %v357
    %359 = vmatprep.subr.mxu0 0.0
    %v360 = vand.u32 %v47, 4294901760
    %v361 = vsub.f32 %v47, %v360
    %v362 = vand.u32 %v361, 4294901760
    %v363 = vsub.f32 %v361, %v362
    %v364 = vand.u32 %v363, 4294901760
    %365 = vmatpush1.msra.mxu0 %v364
    %366 = vmatprep.subr.mxu0 0.0
    %v367 = vand.u32 %v46, 4294901760
    %v368 = vsub.f32 %v46, %v367
    %v369 = vand.u32 %v368, 4294901760
    %v370 = vsub.f32 %v368, %v369
    %v371 = vand.u32 %v370, 4294901760
    %372 = vmatpush1.msra.mxu0 %v371
    %373 = vmatprep.subr.mxu0 0.0
    %v374 = vand.u32 %v77, 4294901760
    %v375 = vsub.f32 %v77, %v374
    %v376 = vand.u32 %v375, 4294901760
    %v377 = vsub.f32 %v375, %v376
    %v378 = vand.u32 %v377, 4294901760
    %379 = vmatpush2.msra.mxu0 %v378
    %380 = vmatprep.subr.mxu0 0.0
    %v381 = vand.u32 %v76, 4294901760
    %v382 = vsub.f32 %v76, %v381
    %v383 = vand.u32 %v382, 4294901760
    %v384 = vsub.f32 %v382, %v383
    %v385 = vand.u32 %v384, 4294901760
    %386 = vmatpush2.msra.mxu0 %v385
    %387 = vmatprep.subr.mxu0 0.0
    %v388 = vand.u32 %v75, 4294901760
    %v389 = vsub.f32 %v75, %v388
    %v390 = vand.u32 %v389, 4294901760
    %v391 = vsub.f32 %v389, %v390
    %v392 = vand.u32 %v391, 4294901760
    %393 = vmatpush2.msra.mxu0 %v392
    %394 = vmatprep.subr.mxu0 0.0
    %v395 = vand.u32 %v74, 4294901760
    %v396 = vsub.f32 %v74, %v395
    %v397 = vand.u32 %v396, 4294901760
    %v398 = vsub.f32 %v396, %v397
    %v399 = vand.u32 %v398, 4294901760
    %400 = vmatpush2.msra.mxu0 %v399
    %401 = vmatprep.subr.mxu0 0.0
    %v402 = vand.u32 %v73, 4294901760
    %v403 = vsub.f32 %v73, %v402
    %v404 = vand.u32 %v403, 4294901760
    %v405 = vsub.f32 %v403, %v404
    %v406 = vand.u32 %v405, 4294901760
    %407 = vmatpush2.msra.mxu0 %v406
    %408 = vmatprep.subr.mxu0 0.0
    %v409 = vand.u32 %v72, 4294901760
    %v410 = vsub.f32 %v72, %v409
    %v411 = vand.u32 %v410, 4294901760
    %v412 = vsub.f32 %v410, %v411
    %v413 = vand.u32 %v412, 4294901760
    %414 = vmatpush2.msra.mxu0 %v413
    %415 = vmatprep.subr.mxu0 0.0
    %v416 = vand.u32 %v71, 4294901760
    %v417 = vsub.f32 %v71, %v416
    %v418 = vand.u32 %v417, 4294901760
    %v419 = vsub.f32 %v417, %v418
    %v420 = vand.u32 %v419, 4294901760
    %421 = vmatpush2.msra.mxu0 %v420
    %422 = vmatprep.subr.mxu0 0.0
    %v423 = vand.u32 %v70, 4294901760
    %v424 = vsub.f32 %v70, %v423
    %v425 = vand.u32 %v424, 4294901760
    %v426 = vsub.f32 %v424, %v425
    %v427 = vand.u32 %v426, 4294901760
    %428 = vmatpush2.msra.mxu0 %v427
    %429 = vmatprep.subr.mxu0 0.0
    %v430 = vand.u32 %v69, 4294901760
    %v431 = vsub.f32 %v69, %v430
    %v432 = vand.u32 %v431, 4294901760
    %v433 = vsub.f32 %v431, %v432
    %v434 = vand.u32 %v433, 4294901760
    %435 = vmatpush2.msra.mxu0 %v434
    %436 = vmatprep.subr.mxu0 0.0
    %v437 = vand.u32 %v68, 4294901760
    %v438 = vsub.f32 %v68, %v437
    %v439 = vand.u32 %v438, 4294901760
    %v440 = vsub.f32 %v438, %v439
    %v441 = vand.u32 %v440, 4294901760
    %442 = vmatpush2.msra.mxu0 %v441
    %443 = vmatprep.subr.mxu0 0.0
    %v444 = vand.u32 %v67, 4294901760
    %v445 = vsub.f32 %v67, %v444
    %v446 = vand.u32 %v445, 4294901760
    %v447 = vsub.f32 %v445, %v446
    %v448 = vand.u32 %v447, 4294901760
    %449 = vmatpush2.msra.mxu0 %v448
    %450 = vmatprep.subr.mxu0 0.0
    %v451 = vand.u32 %v66, 4294901760
    %v452 = vsub.f32 %v66, %v451
    %v453 = vand.u32 %v452, 4294901760
    %v454 = vsub.f32 %v452, %v453
    %v455 = vand.u32 %v454, 4294901760
    %456 = vmatpush2.msra.mxu0 %v455
    %457 = vmatprep.subr.mxu0 0.0
    %v458 = vand.u32 %v65, 4294901760
    %v459 = vsub.f32 %v65, %v458
    %v460 = vand.u32 %v459, 4294901760
    %v461 = vsub.f32 %v459, %v460
    %v462 = vand.u32 %v461, 4294901760
    %463 = vmatpush2.msra.mxu0 %v462
    %464 = vmatprep.subr.mxu0 0.0
    %v465 = vand.u32 %v64, 4294901760
    %v466 = vsub.f32 %v64, %v465
    %v467 = vand.u32 %v466, 4294901760
    %v468 = vsub.f32 %v466, %v467
    %v469 = vand.u32 %v468, 4294901760
    %470 = vmatpush2.msra.mxu0 %v469
    %471 = vmatprep.subr.mxu0 0.0
    %v472 = vand.u32 %v63, 4294901760
    %v473 = vsub.f32 %v63, %v472
    %v474 = vand.u32 %v473, 4294901760
    %v475 = vsub.f32 %v473, %v474
    %v476 = vand.u32 %v475, 4294901760
    %477 = vmatpush2.msra.mxu0 %v476
    %478 = vmatprep.subr.mxu0 0.0
    %v479 = vand.u32 %v62, 4294901760
    %v480 = vsub.f32 %v62, %v479
    %v481 = vand.u32 %v480, 4294901760
    %v482 = vsub.f32 %v480, %v481
    %v483 = vand.u32 %v482, 4294901760
    %484 = vmatpush2.msra.mxu0 %v483
    %v485 = vand.u32 %v41, 4294901760
    %486 = vmatprep.mubr.f32.mxu0 %v485
    %v487 = vand.u32 %v40, 4294901760
    %488 = vmatmul.mubr.f32.gmra.mxu0 %v487
    %v489 = vpop.f32.mrf.mxu0
    %v490 = vadd.f32 %v258, %v489
    %v491 = vpop.f32.mrf.mxu0
    %492 = vdwg.mxu0
    %493 = vmatprep.subr.mxu0 0.0
    %v494 = vand.u32 %v61, 4294901760
    %v495 = vsub.f32 %v61, %v494
    %496 = vmatpush1.msra.mxu0 %v495
    %497 = vmatprep.subr.mxu0 0.0
    %v498 = vand.u32 %v60, 4294901760
    %v499 = vsub.f32 %v60, %v498
    %500 = vmatpush1.msra.mxu0 %v499
    %501 = vmatprep.subr.mxu0 0.0
    %v502 = vand.u32 %v59, 4294901760
    %v503 = vsub.f32 %v59, %v502
    %504 = vmatpush1.msra.mxu0 %v503
    %505 = vmatprep.subr.mxu0 0.0
    %v506 = vand.u32 %v58, 4294901760
    %v507 = vsub.f32 %v58, %v506
    %508 = vmatpush1.msra.mxu0 %v507
    %509 = vmatprep.subr.mxu0 0.0
    %v510 = vand.u32 %v57, 4294901760
    %v511 = vsub.f32 %v57, %v510
    %512 = vmatpush1.msra.mxu0 %v511
    %513 = vmatprep.subr.mxu0 0.0
    %v514 = vand.u32 %v56, 4294901760
    %v515 = vsub.f32 %v56, %v514
    %516 = vmatpush1.msra.mxu0 %v515
    %517 = vmatprep.subr.mxu0 0.0
    %v518 = vand.u32 %v55, 4294901760
    %v519 = vsub.f32 %v55, %v518
    %520 = vmatpush1.msra.mxu0 %v519
    %521 = vmatprep.subr.mxu0 0.0
    %v522 = vand.u32 %v54, 4294901760
    %v523 = vsub.f32 %v54, %v522
    %524 = vmatpush1.msra.mxu0 %v523
    %525 = vmatprep.subr.mxu0 0.0
    %v526 = vand.u32 %v53, 4294901760
    %v527 = vsub.f32 %v53, %v526
    %528 = vmatpush1.msra.mxu0 %v527
    %529 = vmatprep.subr.mxu0 0.0
    %v530 = vand.u32 %v52, 4294901760
    %v531 = vsub.f32 %v52, %v530
    %532 = vmatpush1.msra.mxu0 %v531
    %533 = vmatprep.subr.mxu0 0.0
    %v534 = vand.u32 %v51, 4294901760
    %v535 = vsub.f32 %v51, %v534
    %536 = vmatpush1.msra.mxu0 %v535
    %537 = vmatprep.subr.mxu0 0.0
    %v538 = vand.u32 %v50, 4294901760
    %v539 = vsub.f32 %v50, %v538
    %540 = vmatpush1.msra.mxu0 %v539
    %541 = vmatprep.subr.mxu0 0.0
    %v542 = vand.u32 %v49, 4294901760
    %v543 = vsub.f32 %v49, %v542
    %544 = vmatpush1.msra.mxu0 %v543
    %545 = vmatprep.subr.mxu0 0.0
    %v546 = vand.u32 %v48, 4294901760
    %v547 = vsub.f32 %v48, %v546
    %548 = vmatpush1.msra.mxu0 %v547
    %549 = vmatprep.subr.mxu0 0.0
    %v550 = vand.u32 %v47, 4294901760
    %v551 = vsub.f32 %v47, %v550
    %552 = vmatpush1.msra.mxu0 %v551
    %553 = vmatprep.subr.mxu0 0.0
    %v554 = vand.u32 %v46, 4294901760
    %v555 = vsub.f32 %v46, %v554
    %556 = vmatpush1.msra.mxu0 %v555
    %557 = vmatprep.subr.mxu0 0.0
    %v558 = vand.u32 %v77, 4294901760
    %v559 = vsub.f32 %v77, %v558
    %560 = vmatpush2.msra.mxu0 %v559
    %561 = vmatprep.subr.mxu0 0.0
    %v562 = vand.u32 %v76, 4294901760
    %v563 = vsub.f32 %v76, %v562
    %564 = vmatpush2.msra.mxu0 %v563
    %565 = vmatprep.subr.mxu0 0.0
    %v566 = vand.u32 %v75, 4294901760
    %v567 = vsub.f32 %v75, %v566
    %568 = vmatpush2.msra.mxu0 %v567
    %569 = vmatprep.subr.mxu0 0.0
    %v570 = vand.u32 %v74, 4294901760
    %v571 = vsub.f32 %v74, %v570
    %572 = vmatpush2.msra.mxu0 %v571
    %573 = vmatprep.subr.mxu0 0.0
    %v574 = vand.u32 %v73, 4294901760
    %v575 = vsub.f32 %v73, %v574
    %576 = vmatpush2.msra.mxu0 %v575
    %577 = vmatprep.subr.mxu0 0.0
    %v578 = vand.u32 %v72, 4294901760
    %v579 = vsub.f32 %v72, %v578
    %580 = vmatpush2.msra.mxu0 %v579
    %581 = vmatprep.subr.mxu0 0.0
    %v582 = vand.u32 %v71, 4294901760
    %v583 = vsub.f32 %v71, %v582
    %584 = vmatpush2.msra.mxu0 %v583
    %585 = vmatprep.subr.mxu0 0.0
    %v586 = vand.u32 %v70, 4294901760
    %v587 = vsub.f32 %v70, %v586
    %588 = vmatpush2.msra.mxu0 %v587
    %589 = vmatprep.subr.mxu0 0.0
    %v590 = vand.u32 %v69, 4294901760
    %v591 = vsub.f32 %v69, %v590
    %592 = vmatpush2.msra.mxu0 %v591
    %593 = vmatprep.subr.mxu0 0.0
    %v594 = vand.u32 %v68, 4294901760
    %v595 = vsub.f32 %v68, %v594
    %596 = vmatpush2.msra.mxu0 %v595
    %597 = vmatprep.subr.mxu0 0.0
    %v598 = vand.u32 %v67, 4294901760
    %v599 = vsub.f32 %v67, %v598
    %600 = vmatpush2.msra.mxu0 %v599
    %601 = vmatprep.subr.mxu0 0.0
    %v602 = vand.u32 %v66, 4294901760
    %v603 = vsub.f32 %v66, %v602
    %604 = vmatpush2.msra.mxu0 %v603
    %605 = vmatprep.subr.mxu0 0.0
    %v606 = vand.u32 %v65, 4294901760
    %v607 = vsub.f32 %v65, %v606
    %608 = vmatpush2.msra.mxu0 %v607
    %609 = vmatprep.subr.mxu0 0.0
    %v610 = vand.u32 %v64, 4294901760
    %v611 = vsub.f32 %v64, %v610
    %612 = vmatpush2.msra.mxu0 %v611
    %613 = vmatprep.subr.mxu0 0.0
    %v614 = vand.u32 %v63, 4294901760
    %v615 = vsub.f32 %v63, %v614
    %616 = vmatpush2.msra.mxu0 %v615
    %617 = vmatprep.subr.mxu0 0.0
    %v618 = vand.u32 %v62, 4294901760
    %v619 = vsub.f32 %v62, %v618
    %620 = vmatpush2.msra.mxu0 %v619
    %v621 = vand.u32 %v41, 4294901760
    %v622 = vsub.f32 %v41, %v621
    %623 = vmatprep.mubr.f32.mxu0 %v622
    %v624 = vand.u32 %v40, 4294901760
    %v625 = vsub.f32 %v40, %v624
    %626 = vmatmul.mubr.f32.gmra.mxu0 %v625
    %v627 = vpop.f32.mrf.mxu0
    %v628 = vadd.f32 %v490, %v627
    %v629 = vpop.f32.mrf.mxu0
    %630 = vdwg.mxu0
    %631 = vmatprep.subr.mxu0 0.0
    %v632 = vand.u32 %v61, 4294901760
    %633 = vmatpush1.msra.mxu0 %v632
    %634 = vmatprep.subr.mxu0 0.0
    %v635 = vand.u32 %v60, 4294901760
    %636 = vmatpush1.msra.mxu0 %v635
    %637 = vmatprep.subr.mxu0 0.0
    %v638 = vand.u32 %v59, 4294901760
    %639 = vmatpush1.msra.mxu0 %v638
    %640 = vmatprep.subr.mxu0 0.0
    %v641 = vand.u32 %v58, 4294901760
    %642 = vmatpush1.msra.mxu0 %v641
    %643 = vmatprep.subr.mxu0 0.0
    %v644 = vand.u32 %v57, 4294901760
    %645 = vmatpush1.msra.mxu0 %v644
    %646 = vmatprep.subr.mxu0 0.0
    %v647 = vand.u32 %v56, 4294901760
    %648 = vmatpush1.msra.mxu0 %v647
    %649 = vmatprep.subr.mxu0 0.0
    %v650 = vand.u32 %v55, 4294901760
    %651 = vmatpush1.msra.mxu0 %v650
    %652 = vmatprep.subr.mxu0 0.0
    %v653 = vand.u32 %v54, 4294901760
    %654 = vmatpush1.msra.mxu0 %v653
    %655 = vmatprep.subr.mxu0 0.0
    %v656 = vand.u32 %v53, 4294901760
    %657 = vmatpush1.msra.mxu0 %v656
    %658 = vmatprep.subr.mxu0 0.0
    %v659 = vand.u32 %v52, 4294901760
    %660 = vmatpush1.msra.mxu0 %v659
    %661 = vmatprep.subr.mxu0 0.0
    %v662 = vand.u32 %v51, 4294901760
    %663 = vmatpush1.msra.mxu0 %v662
    %664 = vmatprep.subr.mxu0 0.0
    %v665 = vand.u32 %v50, 4294901760
    %666 = vmatpush1.msra.mxu0 %v665
    %667 = vmatprep.subr.mxu0 0.0
    %v668 = vand.u32 %v49, 4294901760
    %669 = vmatpush1.msra.mxu0 %v668
    %670 = vmatprep.subr.mxu0 0.0
    %v671 = vand.u32 %v48, 4294901760
    %672 = vmatpush1.msra.mxu0 %v671
    %673 = vmatprep.subr.mxu0 0.0
    %v674 = vand.u32 %v47, 4294901760
    %675 = vmatpush1.msra.mxu0 %v674
    %676 = vmatprep.subr.mxu0 0.0
    %v677 = vand.u32 %v46, 4294901760
    %678 = vmatpush1.msra.mxu0 %v677
    %679 = vmatprep.subr.mxu0 0.0
    %v680 = vand.u32 %v77, 4294901760
    %681 = vmatpush2.msra.mxu0 %v680
    %682 = vmatprep.subr.mxu0 0.0
    %v683 = vand.u32 %v76, 4294901760
    %684 = vmatpush2.msra.mxu0 %v683
    %685 = vmatprep.subr.mxu0 0.0
    %v686 = vand.u32 %v75, 4294901760
    %687 = vmatpush2.msra.mxu0 %v686
    %688 = vmatprep.subr.mxu0 0.0
    %v689 = vand.u32 %v74, 4294901760
    %690 = vmatpush2.msra.mxu0 %v689
    %691 = vmatprep.subr.mxu0 0.0
    %v692 = vand.u32 %v73, 4294901760
    %693 = vmatpush2.msra.mxu0 %v692
    %694 = vmatprep.subr.mxu0 0.0
    %v695 = vand.u32 %v72, 4294901760
    %696 = vmatpush2.msra.mxu0 %v695
    %697 = vmatprep.subr.mxu0 0.0
    %v698 = vand.u32 %v71, 4294901760
    %699 = vmatpush2.msra.mxu0 %v698
    %700 = vmatprep.subr.mxu0 0.0
    %v701 = vand.u32 %v70, 4294901760
    %702 = vmatpush2.msra.mxu0 %v701
    %703 = vmatprep.subr.mxu0 0.0
    %v704 = vand.u32 %v69, 4294901760
    %705 = vmatpush2.msra.mxu0 %v704
    %706 = vmatprep.subr.mxu0 0.0
    %v707 = vand.u32 %v68, 4294901760
    %708 = vmatpush2.msra.mxu0 %v707
    %709 = vmatprep.subr.mxu0 0.0
    %v710 = vand.u32 %v67, 4294901760
    %711 = vmatpush2.msra.mxu0 %v710
    %712 = vmatprep.subr.mxu0 0.0
    %v713 = vand.u32 %v66, 4294901760
    %714 = vmatpush2.msra.mxu0 %v713
    %715 = vmatprep.subr.mxu0 0.0
    %v716 = vand.u32 %v65, 4294901760
    %717 = vmatpush2.msra.mxu0 %v716
    %718 = vmatprep.subr.mxu0 0.0
    %v719 = vand.u32 %v64, 4294901760
    %720 = vmatpush2.msra.mxu0 %v719
    %721 = vmatprep.subr.mxu0 0.0
    %v722 = vand.u32 %v63, 4294901760
    %723 = vmatpush2.msra.mxu0 %v722
    %724 = vmatprep.subr.mxu0 0.0
    %v725 = vand.u32 %v62, 4294901760
    %726 = vmatpush2.msra.mxu0 %v725
    %v727 = vand.u32 %v41, 4294901760
    %v728 = vsub.f32 %v41, %v727
    %v729 = vand.u32 %v728, 4294901760
    %730 = vmatprep.mubr.f32.mxu0 %v729
    %v731 = vand.u32 %v40, 4294901760
    %v732 = vsub.f32 %v40, %v731
    %v733 = vand.u32 %v732, 4294901760
    %734 = vmatmul.mubr.f32.gmra.mxu0 %v733
    %v735 = vpop.f32.mrf.mxu0
    %v736 = vadd.f32 %v628, %v735
    %v737 = vpop.f32.mrf.mxu0
    %738 = vdwg.mxu0
    %739 = vmatprep.subr.mxu0 0.0
    %v740 = vand.u32 %v61, 4294901760
    %v741 = vsub.f32 %v61, %v740
    %v742 = vand.u32 %v741, 4294901760
    %743 = vmatpush1.msra.mxu0 %v742
    %744 = vmatprep.subr.mxu0 0.0
    %v745 = vand.u32 %v60, 4294901760
    %v746 = vsub.f32 %v60, %v745
    %v747 = vand.u32 %v746, 4294901760
    %748 = vmatpush1.msra.mxu0 %v747
    %749 = vmatprep.subr.mxu0 0.0
    %v750 = vand.u32 %v59, 4294901760
    %v751 = vsub.f32 %v59, %v750
    %v752 = vand.u32 %v751, 4294901760
    %753 = vmatpush1.msra.mxu0 %v752
    %754 = vmatprep.subr.mxu0 0.0
    %v755 = vand.u32 %v58, 4294901760
    %v756 = vsub.f32 %v58, %v755
    %v757 = vand.u32 %v756, 4294901760
    %758 = vmatpush1.msra.mxu0 %v757
    %759 = vmatprep.subr.mxu0 0.0
    %v760 = vand.u32 %v57, 4294901760
    %v761 = vsub.f32 %v57, %v760
    %v762 = vand.u32 %v761, 4294901760
    %763 = vmatpush1.msra.mxu0 %v762
    %764 = vmatprep.subr.mxu0 0.0
    %v765 = vand.u32 %v56, 4294901760
    %v766 = vsub.f32 %v56, %v765
    %v767 = vand.u32 %v766, 4294901760
    %768 = vmatpush1.msra.mxu0 %v767
    %769 = vmatprep.subr.mxu0 0.0
    %v770 = vand.u32 %v55, 4294901760
    %v771 = vsub.f32 %v55, %v770
    %v772 = vand.u32 %v771, 4294901760
    %773 = vmatpush1.msra.mxu0 %v772
    %774 = vmatprep.subr.mxu0 0.0
    %v775 = vand.u32 %v54, 4294901760
    %v776 = vsub.f32 %v54, %v775
    %v777 = vand.u32 %v776, 4294901760
    %778 = vmatpush1.msra.mxu0 %v777
    %779 = vmatprep.subr.mxu0 0.0
    %v780 = vand.u32 %v53, 4294901760
    %v781 = vsub.f32 %v53, %v780
    %v782 = vand.u32 %v781, 4294901760
    %783 = vmatpush1.msra.mxu0 %v782
    %784 = vmatprep.subr.mxu0 0.0
    %v785 = vand.u32 %v52, 4294901760
    %v786 = vsub.f32 %v52, %v785
    %v787 = vand.u32 %v786, 4294901760
    %788 = vmatpush1.msra.mxu0 %v787
    %789 = vmatprep.subr.mxu0 0.0
    %v790 = vand.u32 %v51, 4294901760
    %v791 = vsub.f32 %v51, %v790
    %v792 = vand.u32 %v791, 4294901760
    %793 = vmatpush1.msra.mxu0 %v792
    %794 = vmatprep.subr.mxu0 0.0
    %v795 = vand.u32 %v50, 4294901760
    %v796 = vsub.f32 %v50, %v795
    %v797 = vand.u32 %v796, 4294901760
    %798 = vmatpush1.msra.mxu0 %v797
    %799 = vmatprep.subr.mxu0 0.0
    %v800 = vand.u32 %v49, 4294901760
    %v801 = vsub.f32 %v49, %v800
    %v802 = vand.u32 %v801, 4294901760
    %803 = vmatpush1.msra.mxu0 %v802
    %804 = vmatprep.subr.mxu0 0.0
    %v805 = vand.u32 %v48, 4294901760
    %v806 = vsub.f32 %v48, %v805
    %v807 = vand.u32 %v806, 4294901760
    %808 = vmatpush1.msra.mxu0 %v807
    %809 = vmatprep.subr.mxu0 0.0
    %v810 = vand.u32 %v47, 4294901760
    %v811 = vsub.f32 %v47, %v810
    %v812 = vand.u32 %v811, 4294901760
    %813 = vmatpush1.msra.mxu0 %v812
    %814 = vmatprep.subr.mxu0 0.0
    %v815 = vand.u32 %v46, 4294901760
    %v816 = vsub.f32 %v46, %v815
    %v817 = vand.u32 %v816, 4294901760
    %818 = vmatpush1.msra.mxu0 %v817
    %819 = vmatprep.subr.mxu0 0.0
    %v820 = vand.u32 %v77, 4294901760
    %v821 = vsub.f32 %v77, %v820
    %v822 = vand.u32 %v821, 4294901760
    %823 = vmatpush2.msra.mxu0 %v822
    %824 = vmatprep.subr.mxu0 0.0
    %v825 = vand.u32 %v76, 4294901760
    %v826 = vsub.f32 %v76, %v825
    %v827 = vand.u32 %v826, 4294901760
    %828 = vmatpush2.msra.mxu0 %v827
    %829 = vmatprep.subr.mxu0 0.0
    %v830 = vand.u32 %v75, 4294901760
    %v831 = vsub.f32 %v75, %v830
    %v832 = vand.u32 %v831, 4294901760
    %833 = vmatpush2.msra.mxu0 %v832
    %834 = vmatprep.subr.mxu0 0.0
    %v835 = vand.u32 %v74, 4294901760
    %v836 = vsub.f32 %v74, %v835
    %v837 = vand.u32 %v836, 4294901760
    %838 = vmatpush2.msra.mxu0 %v837
    %839 = vmatprep.subr.mxu0 0.0
    %v840 = vand.u32 %v73, 4294901760
    %v841 = vsub.f32 %v73, %v840
    %v842 = vand.u32 %v841, 4294901760
    %843 = vmatpush2.msra.mxu0 %v842
    %844 = vmatprep.subr.mxu0 0.0
    %v845 = vand.u32 %v72, 4294901760
    %v846 = vsub.f32 %v72, %v845
    %v847 = vand.u32 %v846, 4294901760
    %848 = vmatpush2.msra.mxu0 %v847
    %849 = vmatprep.subr.mxu0 0.0
    %v850 = vand.u32 %v71, 4294901760
    %v851 = vsub.f32 %v71, %v850
    %v852 = vand.u32 %v851, 4294901760
    %853 = vmatpush2.msra.mxu0 %v852
    %854 = vmatprep.subr.mxu0 0.0
    %v855 = vand.u32 %v70, 4294901760
    %v856 = vsub.f32 %v70, %v855
    %v857 = vand.u32 %v856, 4294901760
    %858 = vmatpush2.msra.mxu0 %v857
    %859 = vmatprep.subr.mxu0 0.0
    %v860 = vand.u32 %v69, 4294901760
    %v861 = vsub.f32 %v69, %v860
    %v862 = vand.u32 %v861, 4294901760
    %863 = vmatpush2.msra.mxu0 %v862
    %864 = vmatprep.subr.mxu0 0.0
    %v865 = vand.u32 %v68, 4294901760
    %v866 = vsub.f32 %v68, %v865
    %v867 = vand.u32 %v866, 4294901760
    %868 = vmatpush2.msra.mxu0 %v867
    %869 = vmatprep.subr.mxu0 0.0
    %v870 = vand.u32 %v67, 4294901760
    %v871 = vsub.f32 %v67, %v870
    %v872 = vand.u32 %v871, 4294901760
    %873 = vmatpush2.msra.mxu0 %v872
    %874 = vmatprep.subr.mxu0 0.0
    %v875 = vand.u32 %v66, 4294901760
    %v876 = vsub.f32 %v66, %v875
    %v877 = vand.u32 %v876, 4294901760
    %878 = vmatpush2.msra.mxu0 %v877
    %879 = vmatprep.subr.mxu0 0.0
    %v880 = vand.u32 %v65, 4294901760
    %v881 = vsub.f32 %v65, %v880
    %v882 = vand.u32 %v881, 4294901760
    %883 = vmatpush2.msra.mxu0 %v882
    %884 = vmatprep.subr.mxu0 0.0
    %v885 = vand.u32 %v64, 4294901760
    %v886 = vsub.f32 %v64, %v885
    %v887 = vand.u32 %v886, 4294901760
    %888 = vmatpush2.msra.mxu0 %v887
    %889 = vmatprep.subr.mxu0 0.0
    %v890 = vand.u32 %v63, 4294901760
    %v891 = vsub.f32 %v63, %v890
    %v892 = vand.u32 %v891, 4294901760
    %893 = vmatpush2.msra.mxu0 %v892
    %894 = vmatprep.subr.mxu0 0.0
    %v895 = vand.u32 %v62, 4294901760
    %v896 = vsub.f32 %v62, %v895
    %v897 = vand.u32 %v896, 4294901760
    %898 = vmatpush2.msra.mxu0 %v897
    %v899 = vand.u32 %v41, 4294901760
    %900 = vmatprep.mubr.f32.mxu0 %v899
    %v901 = vand.u32 %v40, 4294901760
    %902 = vmatmul.mubr.f32.gmra.mxu0 %v901
    %v903 = vpop.f32.mrf.mxu0
    %v904 = vadd.f32 %v736, %v903
    %v905 = vpop.f32.mrf.mxu0
    %906 = vdwg.mxu0
    %907 = vmatprep.subr.mxu0 0.0
    %v908 = vand.u32 %v61, 4294901760
    %909 = vmatpush1.msra.mxu0 %v908
    %910 = vmatprep.subr.mxu0 0.0
    %v911 = vand.u32 %v60, 4294901760
    %912 = vmatpush1.msra.mxu0 %v911
    %913 = vmatprep.subr.mxu0 0.0
    %v914 = vand.u32 %v59, 4294901760
    %915 = vmatpush1.msra.mxu0 %v914
    %916 = vmatprep.subr.mxu0 0.0
    %v917 = vand.u32 %v58, 4294901760
    %918 = vmatpush1.msra.mxu0 %v917
    %919 = vmatprep.subr.mxu0 0.0
    %v920 = vand.u32 %v57, 4294901760
    %921 = vmatpush1.msra.mxu0 %v920
    %922 = vmatprep.subr.mxu0 0.0
    %v923 = vand.u32 %v56, 4294901760
    %924 = vmatpush1.msra.mxu0 %v923
    %925 = vmatprep.subr.mxu0 0.0
    %v926 = vand.u32 %v55, 4294901760
    %927 = vmatpush1.msra.mxu0 %v926
    %928 = vmatprep.subr.mxu0 0.0
    %v929 = vand.u32 %v54, 4294901760
    %930 = vmatpush1.msra.mxu0 %v929
    %931 = vmatprep.subr.mxu0 0.0
    %v932 = vand.u32 %v53, 4294901760
    %933 = vmatpush1.msra.mxu0 %v932
    %934 = vmatprep.subr.mxu0 0.0
    %v935 = vand.u32 %v52, 4294901760
    %936 = vmatpush1.msra.mxu0 %v935
    %937 = vmatprep.subr.mxu0 0.0
    %v938 = vand.u32 %v51, 4294901760
    %939 = vmatpush1.msra.mxu0 %v938
    %940 = vmatprep.subr.mxu0 0.0
    %v941 = vand.u32 %v50, 4294901760
    %942 = vmatpush1.msra.mxu0 %v941
    %943 = vmatprep.subr.mxu0 0.0
    %v944 = vand.u32 %v49, 4294901760
    %945 = vmatpush1.msra.mxu0 %v944
    %946 = vmatprep.subr.mxu0 0.0
    %v947 = vand.u32 %v48, 4294901760
    %948 = vmatpush1.msra.mxu0 %v947
    %949 = vmatprep.subr.mxu0 0.0
    %v950 = vand.u32 %v47, 4294901760
    %951 = vmatpush1.msra.mxu0 %v950
    %952 = vmatprep.subr.mxu0 0.0
    %v953 = vand.u32 %v46, 4294901760
    %954 = vmatpush1.msra.mxu0 %v953
    %955 = vmatprep.subr.mxu0 0.0
    %v956 = vand.u32 %v77, 4294901760
    %957 = vmatpush2.msra.mxu0 %v956
    %958 = vmatprep.subr.mxu0 0.0
    %v959 = vand.u32 %v76, 4294901760
    %960 = vmatpush2.msra.mxu0 %v959
    %961 = vmatprep.subr.mxu0 0.0
    %v962 = vand.u32 %v75, 4294901760
    %963 = vmatpush2.msra.mxu0 %v962
    %964 = vmatprep.subr.mxu0 0.0
    %v965 = vand.u32 %v74, 4294901760
    %966 = vmatpush2.msra.mxu0 %v965
    %967 = vmatprep.subr.mxu0 0.0
    %v968 = vand.u32 %v73, 4294901760
    %969 = vmatpush2.msra.mxu0 %v968
    %970 = vmatprep.subr.mxu0 0.0
    %v971 = vand.u32 %v72, 4294901760
    %972 = vmatpush2.msra.mxu0 %v971
    %973 = vmatprep.subr.mxu0 0.0
    %v974 = vand.u32 %v71, 4294901760
    %975 = vmatpush2.msra.mxu0 %v974
    %976 = vmatprep.subr.mxu0 0.0
    %v977 = vand.u32 %v70, 4294901760
    %978 = vmatpush2.msra.mxu0 %v977
    %979 = vmatprep.subr.mxu0 0.0
    %v980 = vand.u32 %v69, 4294901760
    %981 = vmatpush2.msra.mxu0 %v980
    %982 = vmatprep.subr.mxu0 0.0
    %v983 = vand.u32 %v68, 4294901760
    %984 = vmatpush2.msra.mxu0 %v983
    %985 = vmatprep.subr.mxu0 0.0
    %v986 = vand.u32 %v67, 4294901760
    %987 = vmatpush2.msra.mxu0 %v986
    %988 = vmatprep.subr.mxu0 0.0
    %v989 = vand.u32 %v66, 4294901760
    %990 = vmatpush2.msra.mxu0 %v989
    %991 = vmatprep.subr.mxu0 0.0
    %v992 = vand.u32 %v65, 4294901760
    %993 = vmatpush2.msra.mxu0 %v992
    %994 = vmatprep.subr.mxu0 0.0
    %v995 = vand.u32 %v64, 4294901760
    %996 = vmatpush2.msra.mxu0 %v995
    %997 = vmatprep.subr.mxu0 0.0
    %v998 = vand.u32 %v63, 4294901760
    %999 = vmatpush2.msra.mxu0 %v998
    %1000 = vmatprep.subr.mxu0 0.0
    %v1001 = vand.u32 %v62, 4294901760
    %1002 = vmatpush2.msra.mxu0 %v1001
    %v1003 = vand.u32 %v41, 4294901760
    %1004 = vmatprep.mubr.f32.mxu0 %v1003
    %v1005 = vand.u32 %v40, 4294901760
    %1006 = vmatmul.mubr.f32.gmra.mxu0 %v1005
    %v1007 = vpop.f32.mrf.mxu0
    %v1008 = vadd.f32 %v904, %v1007
    %v1009 = vpop.f32.mrf.mxu0
    %1010 = vdwg.mxu0
    %1011 = vmatprep.subr.mxu0 0.0
    %v1012 = vand.u32 %v93, 4294901760
    %1013 = vmatpush1.msra.mxu0 %v1012
    %1014 = vmatprep.subr.mxu0 0.0
    %v1015 = vand.u32 %v92, 4294901760
    %1016 = vmatpush1.msra.mxu0 %v1015
    %1017 = vmatprep.subr.mxu0 0.0
    %v1018 = vand.u32 %v91, 4294901760
    %1019 = vmatpush1.msra.mxu0 %v1018
    %1020 = vmatprep.subr.mxu0 0.0
    %v1021 = vand.u32 %v90, 4294901760
    %1022 = vmatpush1.msra.mxu0 %v1021
    %1023 = vmatprep.subr.mxu0 0.0
    %v1024 = vand.u32 %v89, 4294901760
    %1025 = vmatpush1.msra.mxu0 %v1024
    %1026 = vmatprep.subr.mxu0 0.0
    %v1027 = vand.u32 %v88, 4294901760
    %1028 = vmatpush1.msra.mxu0 %v1027
    %1029 = vmatprep.subr.mxu0 0.0
    %v1030 = vand.u32 %v87, 4294901760
    %1031 = vmatpush1.msra.mxu0 %v1030
    %1032 = vmatprep.subr.mxu0 0.0
    %v1033 = vand.u32 %v86, 4294901760
    %1034 = vmatpush1.msra.mxu0 %v1033
    %1035 = vmatprep.subr.mxu0 0.0
    %v1036 = vand.u32 %v85, 4294901760
    %1037 = vmatpush1.msra.mxu0 %v1036
    %1038 = vmatprep.subr.mxu0 0.0
    %v1039 = vand.u32 %v84, 4294901760
    %1040 = vmatpush1.msra.mxu0 %v1039
    %1041 = vmatprep.subr.mxu0 0.0
    %v1042 = vand.u32 %v83, 4294901760
    %1043 = vmatpush1.msra.mxu0 %v1042
    %1044 = vmatprep.subr.mxu0 0.0
    %v1045 = vand.u32 %v82, 4294901760
    %1046 = vmatpush1.msra.mxu0 %v1045
    %1047 = vmatprep.subr.mxu0 0.0
    %v1048 = vand.u32 %v81, 4294901760
    %1049 = vmatpush1.msra.mxu0 %v1048
    %1050 = vmatprep.subr.mxu0 0.0
    %v1051 = vand.u32 %v80, 4294901760
    %1052 = vmatpush1.msra.mxu0 %v1051
    %1053 = vmatprep.subr.mxu0 0.0
    %v1054 = vand.u32 %v79, 4294901760
    %1055 = vmatpush1.msra.mxu0 %v1054
    %1056 = vmatprep.subr.mxu0 0.0
    %v1057 = vand.u32 %v78, 4294901760
    %1058 = vmatpush1.msra.mxu0 %v1057
    %1059 = vmatprep.subr.mxu0 0.0
    %v1060 = vand.u32 %v109, 4294901760
    %1061 = vmatpush2.msra.mxu0 %v1060
    %1062 = vmatprep.subr.mxu0 0.0
    %v1063 = vand.u32 %v108, 4294901760
    %1064 = vmatpush2.msra.mxu0 %v1063
    %1065 = vmatprep.subr.mxu0 0.0
    %v1066 = vand.u32 %v107, 4294901760
    %1067 = vmatpush2.msra.mxu0 %v1066
    %1068 = vmatprep.subr.mxu0 0.0
    %v1069 = vand.u32 %v106, 4294901760
    %1070 = vmatpush2.msra.mxu0 %v1069
    %1071 = vmatprep.subr.mxu0 0.0
    %v1072 = vand.u32 %v105, 4294901760
    %1073 = vmatpush2.msra.mxu0 %v1072
    %1074 = vmatprep.subr.mxu0 0.0
    %v1075 = vand.u32 %v104, 4294901760
    %1076 = vmatpush2.msra.mxu0 %v1075
    %1077 = vmatprep.subr.mxu0 0.0
    %v1078 = vand.u32 %v103, 4294901760
    %1079 = vmatpush2.msra.mxu0 %v1078
    %1080 = vmatprep.subr.mxu0 0.0
    %v1081 = vand.u32 %v102, 4294901760
    %1082 = vmatpush2.msra.mxu0 %v1081
    %1083 = vmatprep.subr.mxu0 0.0
    %v1084 = vand.u32 %v101, 4294901760
    %1085 = vmatpush2.msra.mxu0 %v1084
    %1086 = vmatprep.subr.mxu0 0.0
    %v1087 = vand.u32 %v100, 4294901760
    %1088 = vmatpush2.msra.mxu0 %v1087
    %1089 = vmatprep.subr.mxu0 0.0
    %v1090 = vand.u32 %v99, 4294901760
    %1091 = vmatpush2.msra.mxu0 %v1090
    %1092 = vmatprep.subr.mxu0 0.0
    %v1093 = vand.u32 %v98, 4294901760
    %1094 = vmatpush2.msra.mxu0 %v1093
    %1095 = vmatprep.subr.mxu0 0.0
    %v1096 = vand.u32 %v97, 4294901760
    %1097 = vmatpush2.msra.mxu0 %v1096
    %1098 = vmatprep.subr.mxu0 0.0
    %v1099 = vand.u32 %v96, 4294901760
    %1100 = vmatpush2.msra.mxu0 %v1099
    %1101 = vmatprep.subr.mxu0 0.0
    %v1102 = vand.u32 %v95, 4294901760
    %1103 = vmatpush2.msra.mxu0 %v1102
    %1104 = vmatprep.subr.mxu0 0.0
    %v1105 = vand.u32 %v94, 4294901760
    %1106 = vmatpush2.msra.mxu0 %v1105
    %v1107 = vand.u32 %v43, 4294901760
    %v1108 = vsub.f32 %v43, %v1107
    %v1109 = vand.u32 %v1108, 4294901760
    %v1110 = vsub.f32 %v1108, %v1109
    %v1111 = vand.u32 %v1110, 4294901760
    %1112 = vmatprep.mubr.f32.mxu0 %v1111
    %v1113 = vand.u32 %v42, 4294901760
    %v1114 = vsub.f32 %v42, %v1113
    %v1115 = vand.u32 %v1114, 4294901760
    %v1116 = vsub.f32 %v1114, %v1115
    %v1117 = vand.u32 %v1116, 4294901760
    %1118 = vmatmul.mubr.f32.gmra.mxu0 %v1117
    %v1119 = vpop.f32.mrf.mxu0
    %v1120 = vadd.f32 %v1008, %v1119
    %v1121 = vpop.f32.mrf.mxu0
    %1122 = vdwg.mxu0
    %1123 = vmatprep.subr.mxu0 0.0
    %v1124 = vand.u32 %v93, 4294901760
    %v1125 = vsub.f32 %v93, %v1124
    %v1126 = vand.u32 %v1125, 4294901760
    %v1127 = vsub.f32 %v1125, %v1126
    %v1128 = vand.u32 %v1127, 4294901760
    %1129 = vmatpush1.msra.mxu0 %v1128
    %1130 = vmatprep.subr.mxu0 0.0
    %v1131 = vand.u32 %v92, 4294901760
    %v1132 = vsub.f32 %v92, %v1131
    %v1133 = vand.u32 %v1132, 4294901760
    %v1134 = vsub.f32 %v1132, %v1133
    %v1135 = vand.u32 %v1134, 4294901760
    %1136 = vmatpush1.msra.mxu0 %v1135
    %1137 = vmatprep.subr.mxu0 0.0
    %v1138 = vand.u32 %v91, 4294901760
    %v1139 = vsub.f32 %v91, %v1138
    %v1140 = vand.u32 %v1139, 4294901760
    %v1141 = vsub.f32 %v1139, %v1140
    %v1142 = vand.u32 %v1141, 4294901760
    %1143 = vmatpush1.msra.mxu0 %v1142
    %1144 = vmatprep.subr.mxu0 0.0
    %v1145 = vand.u32 %v90, 4294901760
    %v1146 = vsub.f32 %v90, %v1145
    %v1147 = vand.u32 %v1146, 4294901760
    %v1148 = vsub.f32 %v1146, %v1147
    %v1149 = vand.u32 %v1148, 4294901760
    %1150 = vmatpush1.msra.mxu0 %v1149
    %1151 = vmatprep.subr.mxu0 0.0
    %v1152 = vand.u32 %v89, 4294901760
    %v1153 = vsub.f32 %v89, %v1152
    %v1154 = vand.u32 %v1153, 4294901760
    %v1155 = vsub.f32 %v1153, %v1154
    %v1156 = vand.u32 %v1155, 4294901760
    %1157 = vmatpush1.msra.mxu0 %v1156
    %1158 = vmatprep.subr.mxu0 0.0
    %v1159 = vand.u32 %v88, 4294901760
    %v1160 = vsub.f32 %v88, %v1159
    %v1161 = vand.u32 %v1160, 4294901760
    %v1162 = vsub.f32 %v1160, %v1161
    %v1163 = vand.u32 %v1162, 4294901760
    %1164 = vmatpush1.msra.mxu0 %v1163
    %1165 = vmatprep.subr.mxu0 0.0
    %v1166 = vand.u32 %v87, 4294901760
    %v1167 = vsub.f32 %v87, %v1166
    %v1168 = vand.u32 %v1167, 4294901760
    %v1169 = vsub.f32 %v1167, %v1168
    %v1170 = vand.u32 %v1169, 4294901760
    %1171 = vmatpush1.msra.mxu0 %v1170
    %1172 = vmatprep.subr.mxu0 0.0
    %v1173 = vand.u32 %v86, 4294901760
    %v1174 = vsub.f32 %v86, %v1173
    %v1175 = vand.u32 %v1174, 4294901760
    %v1176 = vsub.f32 %v1174, %v1175
    %v1177 = vand.u32 %v1176, 4294901760
    %1178 = vmatpush1.msra.mxu0 %v1177
    %1179 = vmatprep.subr.mxu0 0.0
    %v1180 = vand.u32 %v85, 4294901760
    %v1181 = vsub.f32 %v85, %v1180
    %v1182 = vand.u32 %v1181, 4294901760
    %v1183 = vsub.f32 %v1181, %v1182
    %v1184 = vand.u32 %v1183, 4294901760
    %1185 = vmatpush1.msra.mxu0 %v1184
    %1186 = vmatprep.subr.mxu0 0.0
    %v1187 = vand.u32 %v84, 4294901760
    %v1188 = vsub.f32 %v84, %v1187
    %v1189 = vand.u32 %v1188, 4294901760
    %v1190 = vsub.f32 %v1188, %v1189
    %v1191 = vand.u32 %v1190, 4294901760
    %1192 = vmatpush1.msra.mxu0 %v1191
    %1193 = vmatprep.subr.mxu0 0.0
    %v1194 = vand.u32 %v83, 4294901760
    %v1195 = vsub.f32 %v83, %v1194
    %v1196 = vand.u32 %v1195, 4294901760
    %v1197 = vsub.f32 %v1195, %v1196
    %v1198 = vand.u32 %v1197, 4294901760
    %1199 = vmatpush1.msra.mxu0 %v1198
    %1200 = vmatprep.subr.mxu0 0.0
    %v1201 = vand.u32 %v82, 4294901760
    %v1202 = vsub.f32 %v82, %v1201
    %v1203 = vand.u32 %v1202, 4294901760
    %v1204 = vsub.f32 %v1202, %v1203
    %v1205 = vand.u32 %v1204, 4294901760
    %1206 = vmatpush1.msra.mxu0 %v1205
    %1207 = vmatprep.subr.mxu0 0.0
    %v1208 = vand.u32 %v81, 4294901760
    %v1209 = vsub.f32 %v81, %v1208
    %v1210 = vand.u32 %v1209, 4294901760
    %v1211 = vsub.f32 %v1209, %v1210
    %v1212 = vand.u32 %v1211, 4294901760
    %1213 = vmatpush1.msra.mxu0 %v1212
    %1214 = vmatprep.subr.mxu0 0.0
    %v1215 = vand.u32 %v80, 4294901760
    %v1216 = vsub.f32 %v80, %v1215
    %v1217 = vand.u32 %v1216, 4294901760
    %v1218 = vsub.f32 %v1216, %v1217
    %v1219 = vand.u32 %v1218, 4294901760
    %1220 = vmatpush1.msra.mxu0 %v1219
    %1221 = vmatprep.subr.mxu0 0.0
    %v1222 = vand.u32 %v79, 4294901760
    %v1223 = vsub.f32 %v79, %v1222
    %v1224 = vand.u32 %v1223, 4294901760
    %v1225 = vsub.f32 %v1223, %v1224
    %v1226 = vand.u32 %v1225, 4294901760
    %1227 = vmatpush1.msra.mxu0 %v1226
    %1228 = vmatprep.subr.mxu0 0.0
    %v1229 = vand.u32 %v78, 4294901760
    %v1230 = vsub.f32 %v78, %v1229
    %v1231 = vand.u32 %v1230, 4294901760
    %v1232 = vsub.f32 %v1230, %v1231
    %v1233 = vand.u32 %v1232, 4294901760
    %1234 = vmatpush1.msra.mxu0 %v1233
    %1235 = vmatprep.subr.mxu0 0.0
    %v1236 = vand.u32 %v109, 4294901760
    %v1237 = vsub.f32 %v109, %v1236
    %v1238 = vand.u32 %v1237, 4294901760
    %v1239 = vsub.f32 %v1237, %v1238
    %v1240 = vand.u32 %v1239, 4294901760
    %1241 = vmatpush2.msra.mxu0 %v1240
    %1242 = vmatprep.subr.mxu0 0.0
    %v1243 = vand.u32 %v108, 4294901760
    %v1244 = vsub.f32 %v108, %v1243
    %v1245 = vand.u32 %v1244, 4294901760
    %v1246 = vsub.f32 %v1244, %v1245
    %v1247 = vand.u32 %v1246, 4294901760
    %1248 = vmatpush2.msra.mxu0 %v1247
    %1249 = vmatprep.subr.mxu0 0.0
    %v1250 = vand.u32 %v107, 4294901760
    %v1251 = vsub.f32 %v107, %v1250
    %v1252 = vand.u32 %v1251, 4294901760
    %v1253 = vsub.f32 %v1251, %v1252
    %v1254 = vand.u32 %v1253, 4294901760
    %1255 = vmatpush2.msra.mxu0 %v1254
    %1256 = vmatprep.subr.mxu0 0.0
    %v1257 = vand.u32 %v106, 4294901760
    %v1258 = vsub.f32 %v106, %v1257
    %v1259 = vand.u32 %v1258, 4294901760
    %v1260 = vsub.f32 %v1258, %v1259
    %v1261 = vand.u32 %v1260, 4294901760
    %1262 = vmatpush2.msra.mxu0 %v1261
    %1263 = vmatprep.subr.mxu0 0.0
    %v1264 = vand.u32 %v105, 4294901760
    %v1265 = vsub.f32 %v105, %v1264
    %v1266 = vand.u32 %v1265, 4294901760
    %v1267 = vsub.f32 %v1265, %v1266
    %v1268 = vand.u32 %v1267, 4294901760
    %1269 = vmatpush2.msra.mxu0 %v1268
    %1270 = vmatprep.subr.mxu0 0.0
    %v1271 = vand.u32 %v104, 4294901760
    %v1272 = vsub.f32 %v104, %v1271
    %v1273 = vand.u32 %v1272, 4294901760
    %v1274 = vsub.f32 %v1272, %v1273
    %v1275 = vand.u32 %v1274, 4294901760
    %1276 = vmatpush2.msra.mxu0 %v1275
    %1277 = vmatprep.subr.mxu0 0.0
    %v1278 = vand.u32 %v103, 4294901760
    %v1279 = vsub.f32 %v103, %v1278
    %v1280 = vand.u32 %v1279, 4294901760
    %v1281 = vsub.f32 %v1279, %v1280
    %v1282 = vand.u32 %v1281, 4294901760
    %1283 = vmatpush2.msra.mxu0 %v1282
    %1284 = vmatprep.subr.mxu0 0.0
    %v1285 = vand.u32 %v102, 4294901760
    %v1286 = vsub.f32 %v102, %v1285
    %v1287 = vand.u32 %v1286, 4294901760
    %v1288 = vsub.f32 %v1286, %v1287
    %v1289 = vand.u32 %v1288, 4294901760
    %1290 = vmatpush2.msra.mxu0 %v1289
    %1291 = vmatprep.subr.mxu0 0.0
    %v1292 = vand.u32 %v101, 4294901760
    %v1293 = vsub.f32 %v101, %v1292
    %v1294 = vand.u32 %v1293, 4294901760
    %v1295 = vsub.f32 %v1293, %v1294
    %v1296 = vand.u32 %v1295, 4294901760
    %1297 = vmatpush2.msra.mxu0 %v1296
    %1298 = vmatprep.subr.mxu0 0.0
    %v1299 = vand.u32 %v100, 4294901760
    %v1300 = vsub.f32 %v100, %v1299
    %v1301 = vand.u32 %v1300, 4294901760
    %v1302 = vsub.f32 %v1300, %v1301
    %v1303 = vand.u32 %v1302, 4294901760
    %1304 = vmatpush2.msra.mxu0 %v1303
    %1305 = vmatprep.subr.mxu0 0.0
    %v1306 = vand.u32 %v99, 4294901760
    %v1307 = vsub.f32 %v99, %v1306
    %v1308 = vand.u32 %v1307, 4294901760
    %v1309 = vsub.f32 %v1307, %v1308
    %v1310 = vand.u32 %v1309, 4294901760
    %1311 = vmatpush2.msra.mxu0 %v1310
    %1312 = vmatprep.subr.mxu0 0.0
    %v1313 = vand.u32 %v98, 4294901760
    %v1314 = vsub.f32 %v98, %v1313
    %v1315 = vand.u32 %v1314, 4294901760
    %v1316 = vsub.f32 %v1314, %v1315
    %v1317 = vand.u32 %v1316, 4294901760
    %1318 = vmatpush2.msra.mxu0 %v1317
    %1319 = vmatprep.subr.mxu0 0.0
    %v1320 = vand.u32 %v97, 4294901760
    %v1321 = vsub.f32 %v97, %v1320
    %v1322 = vand.u32 %v1321, 4294901760
    %v1323 = vsub.f32 %v1321, %v1322
    %v1324 = vand.u32 %v1323, 4294901760
    %1325 = vmatpush2.msra.mxu0 %v1324
    %1326 = vmatprep.subr.mxu0 0.0
    %v1327 = vand.u32 %v96, 4294901760
    %v1328 = vsub.f32 %v96, %v1327
    %v1329 = vand.u32 %v1328, 4294901760
    %v1330 = vsub.f32 %v1328, %v1329
    %v1331 = vand.u32 %v1330, 4294901760
    %1332 = vmatpush2.msra.mxu0 %v1331
    %1333 = vmatprep.subr.mxu0 0.0
    %v1334 = vand.u32 %v95, 4294901760
    %v1335 = vsub.f32 %v95, %v1334
    %v1336 = vand.u32 %v1335, 4294901760
    %v1337 = vsub.f32 %v1335, %v1336
    %v1338 = vand.u32 %v1337, 4294901760
    %1339 = vmatpush2.msra.mxu0 %v1338
    %1340 = vmatprep.subr.mxu0 0.0
    %v1341 = vand.u32 %v94, 4294901760
    %v1342 = vsub.f32 %v94, %v1341
    %v1343 = vand.u32 %v1342, 4294901760
    %v1344 = vsub.f32 %v1342, %v1343
    %v1345 = vand.u32 %v1344, 4294901760
    %1346 = vmatpush2.msra.mxu0 %v1345
    %v1347 = vand.u32 %v43, 4294901760
    %1348 = vmatprep.mubr.f32.mxu0 %v1347
    %v1349 = vand.u32 %v42, 4294901760
    %1350 = vmatmul.mubr.f32.gmra.mxu0 %v1349
    %v1351 = vpop.f32.mrf.mxu0
    %v1352 = vadd.f32 %v1120, %v1351
    %v1353 = vpop.f32.mrf.mxu0
    %1354 = vdwg.mxu0
    %1355 = vmatprep.subr.mxu0 0.0
    %v1356 = vand.u32 %v93, 4294901760
    %v1357 = vsub.f32 %v93, %v1356
    %1358 = vmatpush1.msra.mxu0 %v1357
    %1359 = vmatprep.subr.mxu0 0.0
    %v1360 = vand.u32 %v92, 4294901760
    %v1361 = vsub.f32 %v92, %v1360
    %1362 = vmatpush1.msra.mxu0 %v1361
    %1363 = vmatprep.subr.mxu0 0.0
    %v1364 = vand.u32 %v91, 4294901760
    %v1365 = vsub.f32 %v91, %v1364
    %1366 = vmatpush1.msra.mxu0 %v1365
    %1367 = vmatprep.subr.mxu0 0.0
    %v1368 = vand.u32 %v90, 4294901760
    %v1369 = vsub.f32 %v90, %v1368
    %1370 = vmatpush1.msra.mxu0 %v1369
    %1371 = vmatprep.subr.mxu0 0.0
    %v1372 = vand.u32 %v89, 4294901760
    %v1373 = vsub.f32 %v89, %v1372
    %1374 = vmatpush1.msra.mxu0 %v1373
    %1375 = vmatprep.subr.mxu0 0.0
    %v1376 = vand.u32 %v88, 4294901760
    %v1377 = vsub.f32 %v88, %v1376
    %1378 = vmatpush1.msra.mxu0 %v1377
    %1379 = vmatprep.subr.mxu0 0.0
    %v1380 = vand.u32 %v87, 4294901760
    %v1381 = vsub.f32 %v87, %v1380
    %1382 = vmatpush1.msra.mxu0 %v1381
    %1383 = vmatprep.subr.mxu0 0.0
    %v1384 = vand.u32 %v86, 4294901760
    %v1385 = vsub.f32 %v86, %v1384
    %1386 = vmatpush1.msra.mxu0 %v1385
    %1387 = vmatprep.subr.mxu0 0.0
    %v1388 = vand.u32 %v85, 4294901760
    %v1389 = vsub.f32 %v85, %v1388
    %1390 = vmatpush1.msra.mxu0 %v1389
    %1391 = vmatprep.subr.mxu0 0.0
    %v1392 = vand.u32 %v84, 4294901760
    %v1393 = vsub.f32 %v84, %v1392
    %1394 = vmatpush1.msra.mxu0 %v1393
    %1395 = vmatprep.subr.mxu0 0.0
    %v1396 = vand.u32 %v83, 4294901760
    %v1397 = vsub.f32 %v83, %v1396
    %1398 = vmatpush1.msra.mxu0 %v1397
    %1399 = vmatprep.subr.mxu0 0.0
    %v1400 = vand.u32 %v82, 4294901760
    %v1401 = vsub.f32 %v82, %v1400
    %1402 = vmatpush1.msra.mxu0 %v1401
    %1403 = vmatprep.subr.mxu0 0.0
    %v1404 = vand.u32 %v81, 4294901760
    %v1405 = vsub.f32 %v81, %v1404
    %1406 = vmatpush1.msra.mxu0 %v1405
    %1407 = vmatprep.subr.mxu0 0.0
    %v1408 = vand.u32 %v80, 4294901760
    %v1409 = vsub.f32 %v80, %v1408
    %1410 = vmatpush1.msra.mxu0 %v1409
    %1411 = vmatprep.subr.mxu0 0.0
    %v1412 = vand.u32 %v79, 4294901760
    %v1413 = vsub.f32 %v79, %v1412
    %1414 = vmatpush1.msra.mxu0 %v1413
    %1415 = vmatprep.subr.mxu0 0.0
    %v1416 = vand.u32 %v78, 4294901760
    %v1417 = vsub.f32 %v78, %v1416
    %1418 = vmatpush1.msra.mxu0 %v1417
    %1419 = vmatprep.subr.mxu0 0.0
    %v1420 = vand.u32 %v109, 4294901760
    %v1421 = vsub.f32 %v109, %v1420
    %1422 = vmatpush2.msra.mxu0 %v1421
    %1423 = vmatprep.subr.mxu0 0.0
    %v1424 = vand.u32 %v108, 4294901760
    %v1425 = vsub.f32 %v108, %v1424
    %1426 = vmatpush2.msra.mxu0 %v1425
    %1427 = vmatprep.subr.mxu0 0.0
    %v1428 = vand.u32 %v107, 4294901760
    %v1429 = vsub.f32 %v107, %v1428
    %1430 = vmatpush2.msra.mxu0 %v1429
    %1431 = vmatprep.subr.mxu0 0.0
    %v1432 = vand.u32 %v106, 4294901760
    %v1433 = vsub.f32 %v106, %v1432
    %1434 = vmatpush2.msra.mxu0 %v1433
    %1435 = vmatprep.subr.mxu0 0.0
    %v1436 = vand.u32 %v105, 4294901760
    %v1437 = vsub.f32 %v105, %v1436
    %1438 = vmatpush2.msra.mxu0 %v1437
    %1439 = vmatprep.subr.mxu0 0.0
    %v1440 = vand.u32 %v104, 4294901760
    %v1441 = vsub.f32 %v104, %v1440
    %1442 = vmatpush2.msra.mxu0 %v1441
    %1443 = vmatprep.subr.mxu0 0.0
    %v1444 = vand.u32 %v103, 4294901760
    %v1445 = vsub.f32 %v103, %v1444
    %1446 = vmatpush2.msra.mxu0 %v1445
    %1447 = vmatprep.subr.mxu0 0.0
    %v1448 = vand.u32 %v102, 4294901760
    %v1449 = vsub.f32 %v102, %v1448
    %1450 = vmatpush2.msra.mxu0 %v1449
    %1451 = vmatprep.subr.mxu0 0.0
    %v1452 = vand.u32 %v101, 4294901760
    %v1453 = vsub.f32 %v101, %v1452
    %1454 = vmatpush2.msra.mxu0 %v1453
    %1455 = vmatprep.subr.mxu0 0.0
    %v1456 = vand.u32 %v100, 4294901760
    %v1457 = vsub.f32 %v100, %v1456
    %1458 = vmatpush2.msra.mxu0 %v1457
    %1459 = vmatprep.subr.mxu0 0.0
    %v1460 = vand.u32 %v99, 4294901760
    %v1461 = vsub.f32 %v99, %v1460
    %1462 = vmatpush2.msra.mxu0 %v1461
    %1463 = vmatprep.subr.mxu0 0.0
    %v1464 = vand.u32 %v98, 4294901760
    %v1465 = vsub.f32 %v98, %v1464
    %1466 = vmatpush2.msra.mxu0 %v1465
    %1467 = vmatprep.subr.mxu0 0.0
    %v1468 = vand.u32 %v97, 4294901760
    %v1469 = vsub.f32 %v97, %v1468
    %1470 = vmatpush2.msra.mxu0 %v1469
    %1471 = vmatprep.subr.mxu0 0.0
    %v1472 = vand.u32 %v96, 4294901760
    %v1473 = vsub.f32 %v96, %v1472
    %1474 = vmatpush2.msra.mxu0 %v1473
    %1475 = vmatprep.subr.mxu0 0.0
    %v1476 = vand.u32 %v95, 4294901760
    %v1477 = vsub.f32 %v95, %v1476
    %1478 = vmatpush2.msra.mxu0 %v1477
    %1479 = vmatprep.subr.mxu0 0.0
    %v1480 = vand.u32 %v94, 4294901760
    %v1481 = vsub.f32 %v94, %v1480
    %1482 = vmatpush2.msra.mxu0 %v1481
    %v1483 = vand.u32 %v43, 4294901760
    %v1484 = vsub.f32 %v43, %v1483
    %1485 = vmatprep.mubr.f32.mxu0 %v1484
    %v1486 = vand.u32 %v42, 4294901760
    %v1487 = vsub.f32 %v42, %v1486
    %1488 = vmatmul.mubr.f32.gmra.mxu0 %v1487
    %v1489 = vpop.f32.mrf.mxu0
    %v1490 = vadd.f32 %v1352, %v1489
    %v1491 = vpop.f32.mrf.mxu0
    %1492 = vdwg.mxu0
    %1493 = vmatprep.subr.mxu0 0.0
    %v1494 = vand.u32 %v93, 4294901760
    %1495 = vmatpush1.msra.mxu0 %v1494
    %1496 = vmatprep.subr.mxu0 0.0
    %v1497 = vand.u32 %v92, 4294901760
    %1498 = vmatpush1.msra.mxu0 %v1497
    %1499 = vmatprep.subr.mxu0 0.0
    %v1500 = vand.u32 %v91, 4294901760
    %1501 = vmatpush1.msra.mxu0 %v1500
    %1502 = vmatprep.subr.mxu0 0.0
    %v1503 = vand.u32 %v90, 4294901760
    %1504 = vmatpush1.msra.mxu0 %v1503
    %1505 = vmatprep.subr.mxu0 0.0
    %v1506 = vand.u32 %v89, 4294901760
    %1507 = vmatpush1.msra.mxu0 %v1506
    %1508 = vmatprep.subr.mxu0 0.0
    %v1509 = vand.u32 %v88, 4294901760
    %1510 = vmatpush1.msra.mxu0 %v1509
    %1511 = vmatprep.subr.mxu0 0.0
    %v1512 = vand.u32 %v87, 4294901760
    %1513 = vmatpush1.msra.mxu0 %v1512
    %1514 = vmatprep.subr.mxu0 0.0
    %v1515 = vand.u32 %v86, 4294901760
    %1516 = vmatpush1.msra.mxu0 %v1515
    %1517 = vmatprep.subr.mxu0 0.0
    %v1518 = vand.u32 %v85, 4294901760
    %1519 = vmatpush1.msra.mxu0 %v1518
    %1520 = vmatprep.subr.mxu0 0.0
    %v1521 = vand.u32 %v84, 4294901760
    %1522 = vmatpush1.msra.mxu0 %v1521
    %1523 = vmatprep.subr.mxu0 0.0
    %v1524 = vand.u32 %v83, 4294901760
    %1525 = vmatpush1.msra.mxu0 %v1524
    %1526 = vmatprep.subr.mxu0 0.0
    %v1527 = vand.u32 %v82, 4294901760
    %1528 = vmatpush1.msra.mxu0 %v1527
    %1529 = vmatprep.subr.mxu0 0.0
    %v1530 = vand.u32 %v81, 4294901760
    %1531 = vmatpush1.msra.mxu0 %v1530
    %1532 = vmatprep.subr.mxu0 0.0
    %v1533 = vand.u32 %v80, 4294901760
    %1534 = vmatpush1.msra.mxu0 %v1533
    %1535 = vmatprep.subr.mxu0 0.0
    %v1536 = vand.u32 %v79, 4294901760
    %1537 = vmatpush1.msra.mxu0 %v1536
    %1538 = vmatprep.subr.mxu0 0.0
    %v1539 = vand.u32 %v78, 4294901760
    %1540 = vmatpush1.msra.mxu0 %v1539
    %1541 = vmatprep.subr.mxu0 0.0
    %v1542 = vand.u32 %v109, 4294901760
    %1543 = vmatpush2.msra.mxu0 %v1542
    %1544 = vmatprep.subr.mxu0 0.0
    %v1545 = vand.u32 %v108, 4294901760
    %1546 = vmatpush2.msra.mxu0 %v1545
    %1547 = vmatprep.subr.mxu0 0.0
    %v1548 = vand.u32 %v107, 4294901760
    %1549 = vmatpush2.msra.mxu0 %v1548
    %1550 = vmatprep.subr.mxu0 0.0
    %v1551 = vand.u32 %v106, 4294901760
    %1552 = vmatpush2.msra.mxu0 %v1551
    %1553 = vmatprep.subr.mxu0 0.0
    %v1554 = vand.u32 %v105, 4294901760
    %1555 = vmatpush2.msra.mxu0 %v1554
    %1556 = vmatprep.subr.mxu0 0.0
    %v1557 = vand.u32 %v104, 4294901760
    %1558 = vmatpush2.msra.mxu0 %v1557
    %1559 = vmatprep.subr.mxu0 0.0
    %v1560 = vand.u32 %v103, 4294901760
    %1561 = vmatpush2.msra.mxu0 %v1560
    %1562 = vmatprep.subr.mxu0 0.0
    %v1563 = vand.u32 %v102, 4294901760
    %1564 = vmatpush2.msra.mxu0 %v1563
    %1565 = vmatprep.subr.mxu0 0.0
    %v1566 = vand.u32 %v101, 4294901760
    %1567 = vmatpush2.msra.mxu0 %v1566
    %1568 = vmatprep.subr.mxu0 0.0
    %v1569 = vand.u32 %v100, 4294901760
    %1570 = vmatpush2.msra.mxu0 %v1569
    %1571 = vmatprep.subr.mxu0 0.0
    %v1572 = vand.u32 %v99, 4294901760
    %1573 = vmatpush2.msra.mxu0 %v1572
    %1574 = vmatprep.subr.mxu0 0.0
    %v1575 = vand.u32 %v98, 4294901760
    %1576 = vmatpush2.msra.mxu0 %v1575
    %1577 = vmatprep.subr.mxu0 0.0
    %v1578 = vand.u32 %v97, 4294901760
    %1579 = vmatpush2.msra.mxu0 %v1578
    %1580 = vmatprep.subr.mxu0 0.0
    %v1581 = vand.u32 %v96, 4294901760
    %1582 = vmatpush2.msra.mxu0 %v1581
    %1583 = vmatprep.subr.mxu0 0.0
    %v1584 = vand.u32 %v95, 4294901760
    %1585 = vmatpush2.msra.mxu0 %v1584
    %1586 = vmatprep.subr.mxu0 0.0
    %v1587 = vand.u32 %v94, 4294901760
    %1588 = vmatpush2.msra.mxu0 %v1587
    %v1589 = vand.u32 %v43, 4294901760
    %v1590 = vsub.f32 %v43, %v1589
    %v1591 = vand.u32 %v1590, 4294901760
    %1592 = vmatprep.mubr.f32.mxu0 %v1591
    %v1593 = vand.u32 %v42, 4294901760
    %v1594 = vsub.f32 %v42, %v1593
    %v1595 = vand.u32 %v1594, 4294901760
    %1596 = vmatmul.mubr.f32.gmra.mxu0 %v1595
    %v1597 = vpop.f32.mrf.mxu0
    %v1598 = vadd.f32 %v1490, %v1597
    %v1599 = vpop.f32.mrf.mxu0
    %1600 = vdwg.mxu0
    %1601 = vmatprep.subr.mxu0 0.0
    %v1602 = vand.u32 %v93, 4294901760
    %v1603 = vsub.f32 %v93, %v1602
    %v1604 = vand.u32 %v1603, 4294901760
    %1605 = vmatpush1.msra.mxu0 %v1604
    %1606 = vmatprep.subr.mxu0 0.0
    %v1607 = vand.u32 %v92, 4294901760
    %v1608 = vsub.f32 %v92, %v1607
    %v1609 = vand.u32 %v1608, 4294901760
    %1610 = vmatpush1.msra.mxu0 %v1609
    %1611 = vmatprep.subr.mxu0 0.0
    %v1612 = vand.u32 %v91, 4294901760
    %v1613 = vsub.f32 %v91, %v1612
    %v1614 = vand.u32 %v1613, 4294901760
    %1615 = vmatpush1.msra.mxu0 %v1614
    %1616 = vmatprep.subr.mxu0 0.0
    %v1617 = vand.u32 %v90, 4294901760
    %v1618 = vsub.f32 %v90, %v1617
    %v1619 = vand.u32 %v1618, 4294901760
    %1620 = vmatpush1.msra.mxu0 %v1619
    %1621 = vmatprep.subr.mxu0 0.0
    %v1622 = vand.u32 %v89, 4294901760
    %v1623 = vsub.f32 %v89, %v1622
    %v1624 = vand.u32 %v1623, 4294901760
    %1625 = vmatpush1.msra.mxu0 %v1624
    %1626 = vmatprep.subr.mxu0 0.0
    %v1627 = vand.u32 %v88, 4294901760
    %v1628 = vsub.f32 %v88, %v1627
    %v1629 = vand.u32 %v1628, 4294901760
    %1630 = vmatpush1.msra.mxu0 %v1629
    %1631 = vmatprep.subr.mxu0 0.0
    %v1632 = vand.u32 %v87, 4294901760
    %v1633 = vsub.f32 %v87, %v1632
    %v1634 = vand.u32 %v1633, 4294901760
    %1635 = vmatpush1.msra.mxu0 %v1634
    %1636 = vmatprep.subr.mxu0 0.0
    %v1637 = vand.u32 %v86, 4294901760
    %v1638 = vsub.f32 %v86, %v1637
    %v1639 = vand.u32 %v1638, 4294901760
    %1640 = vmatpush1.msra.mxu0 %v1639
    %1641 = vmatprep.subr.mxu0 0.0
    %v1642 = vand.u32 %v85, 4294901760
    %v1643 = vsub.f32 %v85, %v1642
    %v1644 = vand.u32 %v1643, 4294901760
    %1645 = vmatpush1.msra.mxu0 %v1644
    %1646 = vmatprep.subr.mxu0 0.0
    %v1647 = vand.u32 %v84, 4294901760
    %v1648 = vsub.f32 %v84, %v1647
    %v1649 = vand.u32 %v1648, 4294901760
    %1650 = vmatpush1.msra.mxu0 %v1649
    %1651 = vmatprep.subr.mxu0 0.0
    %v1652 = vand.u32 %v83, 4294901760
    %v1653 = vsub.f32 %v83, %v1652
    %v1654 = vand.u32 %v1653, 4294901760
    %1655 = vmatpush1.msra.mxu0 %v1654
    %1656 = vmatprep.subr.mxu0 0.0
    %v1657 = vand.u32 %v82, 4294901760
    %v1658 = vsub.f32 %v82, %v1657
    %v1659 = vand.u32 %v1658, 4294901760
    %1660 = vmatpush1.msra.mxu0 %v1659
    %1661 = vmatprep.subr.mxu0 0.0
    %v1662 = vand.u32 %v81, 4294901760
    %v1663 = vsub.f32 %v81, %v1662
    %v1664 = vand.u32 %v1663, 4294901760
    %1665 = vmatpush1.msra.mxu0 %v1664
    %1666 = vmatprep.subr.mxu0 0.0
    %v1667 = vand.u32 %v80, 4294901760
    %v1668 = vsub.f32 %v80, %v1667
    %v1669 = vand.u32 %v1668, 4294901760
    %1670 = vmatpush1.msra.mxu0 %v1669
    %1671 = vmatprep.subr.mxu0 0.0
    %v1672 = vand.u32 %v79, 4294901760
    %v1673 = vsub.f32 %v79, %v1672
    %v1674 = vand.u32 %v1673, 4294901760
    %1675 = vmatpush1.msra.mxu0 %v1674
    %1676 = vmatprep.subr.mxu0 0.0
    %v1677 = vand.u32 %v78, 4294901760
    %v1678 = vsub.f32 %v78, %v1677
    %v1679 = vand.u32 %v1678, 4294901760
    %1680 = vmatpush1.msra.mxu0 %v1679
    %1681 = vmatprep.subr.mxu0 0.0
    %v1682 = vand.u32 %v109, 4294901760
    %v1683 = vsub.f32 %v109, %v1682
    %v1684 = vand.u32 %v1683, 4294901760
    %1685 = vmatpush2.msra.mxu0 %v1684
    %1686 = vmatprep.subr.mxu0 0.0
    %v1687 = vand.u32 %v108, 4294901760
    %v1688 = vsub.f32 %v108, %v1687
    %v1689 = vand.u32 %v1688, 4294901760
    %1690 = vmatpush2.msra.mxu0 %v1689
    %1691 = vmatprep.subr.mxu0 0.0
    %v1692 = vand.u32 %v107, 4294901760
    %v1693 = vsub.f32 %v107, %v1692
    %v1694 = vand.u32 %v1693, 4294901760
    %1695 = vmatpush2.msra.mxu0 %v1694
    %1696 = vmatprep.subr.mxu0 0.0
    %v1697 = vand.u32 %v106, 4294901760
    %v1698 = vsub.f32 %v106, %v1697
    %v1699 = vand.u32 %v1698, 4294901760
    %1700 = vmatpush2.msra.mxu0 %v1699
    %1701 = vmatprep.subr.mxu0 0.0
    %v1702 = vand.u32 %v105, 4294901760
    %v1703 = vsub.f32 %v105, %v1702
    %v1704 = vand.u32 %v1703, 4294901760
    %1705 = vmatpush2.msra.mxu0 %v1704
    %1706 = vmatprep.subr.mxu0 0.0
    %v1707 = vand.u32 %v104, 4294901760
    %v1708 = vsub.f32 %v104, %v1707
    %v1709 = vand.u32 %v1708, 4294901760
    %1710 = vmatpush2.msra.mxu0 %v1709
    %1711 = vmatprep.subr.mxu0 0.0
    %v1712 = vand.u32 %v103, 4294901760
    %v1713 = vsub.f32 %v103, %v1712
    %v1714 = vand.u32 %v1713, 4294901760
    %1715 = vmatpush2.msra.mxu0 %v1714
    %1716 = vmatprep.subr.mxu0 0.0
    %v1717 = vand.u32 %v102, 4294901760
    %v1718 = vsub.f32 %v102, %v1717
    %v1719 = vand.u32 %v1718, 4294901760
    %1720 = vmatpush2.msra.mxu0 %v1719
    %1721 = vmatprep.subr.mxu0 0.0
    %v1722 = vand.u32 %v101, 4294901760
    %v1723 = vsub.f32 %v101, %v1722
    %v1724 = vand.u32 %v1723, 4294901760
    %1725 = vmatpush2.msra.mxu0 %v1724
    %1726 = vmatprep.subr.mxu0 0.0
    %v1727 = vand.u32 %v100, 4294901760
    %v1728 = vsub.f32 %v100, %v1727
    %v1729 = vand.u32 %v1728, 4294901760
    %1730 = vmatpush2.msra.mxu0 %v1729
    %1731 = vmatprep.subr.mxu0 0.0
    %v1732 = vand.u32 %v99, 4294901760
    %v1733 = vsub.f32 %v99, %v1732
    %v1734 = vand.u32 %v1733, 4294901760
    %1735 = vmatpush2.msra.mxu0 %v1734
    %1736 = vmatprep.subr.mxu0 0.0
    %v1737 = vand.u32 %v98, 4294901760
    %v1738 = vsub.f32 %v98, %v1737
    %v1739 = vand.u32 %v1738, 4294901760
    %1740 = vmatpush2.msra.mxu0 %v1739
    %1741 = vmatprep.subr.mxu0 0.0
    %v1742 = vand.u32 %v97, 4294901760
    %v1743 = vsub.f32 %v97, %v1742
    %v1744 = vand.u32 %v1743, 4294901760
    %1745 = vmatpush2.msra.mxu0 %v1744
    %1746 = vmatprep.subr.mxu0 0.0
    %v1747 = vand.u32 %v96, 4294901760
    %v1748 = vsub.f32 %v96, %v1747
    %v1749 = vand.u32 %v1748, 4294901760
    %1750 = vmatpush2.msra.mxu0 %v1749
    %1751 = vmatprep.subr.mxu0 0.0
    %v1752 = vand.u32 %v95, 4294901760
    %v1753 = vsub.f32 %v95, %v1752
    %v1754 = vand.u32 %v1753, 4294901760
    %1755 = vmatpush2.msra.mxu0 %v1754
    %1756 = vmatprep.subr.mxu0 0.0
    %v1757 = vand.u32 %v94, 4294901760
    %v1758 = vsub.f32 %v94, %v1757
    %v1759 = vand.u32 %v1758, 4294901760
    %1760 = vmatpush2.msra.mxu0 %v1759
    %v1761 = vand.u32 %v43, 4294901760
    %1762 = vmatprep.mubr.f32.mxu0 %v1761
    %v1763 = vand.u32 %v42, 4294901760
    %1764 = vmatmul.mubr.f32.gmra.mxu0 %v1763
    %v1765 = vpop.f32.mrf.mxu0
    %v1766 = vadd.f32 %v1598, %v1765
    %v1767 = vpop.f32.mrf.mxu0
    %1768 = vdwg.mxu0
    %1769 = vmatprep.subr.mxu0 0.0
    %v1770 = vand.u32 %v93, 4294901760
    %1771 = vmatpush1.msra.mxu0 %v1770
    %1772 = vmatprep.subr.mxu0 0.0
    %v1773 = vand.u32 %v92, 4294901760
    %1774 = vmatpush1.msra.mxu0 %v1773
    %1775 = vmatprep.subr.mxu0 0.0
    %v1776 = vand.u32 %v91, 4294901760
    %1777 = vmatpush1.msra.mxu0 %v1776
    %1778 = vmatprep.subr.mxu0 0.0
    %v1779 = vand.u32 %v90, 4294901760
    %1780 = vmatpush1.msra.mxu0 %v1779
    %1781 = vmatprep.subr.mxu0 0.0
    %v1782 = vand.u32 %v89, 4294901760
    %1783 = vmatpush1.msra.mxu0 %v1782
    %1784 = vmatprep.subr.mxu0 0.0
    %v1785 = vand.u32 %v88, 4294901760
    %1786 = vmatpush1.msra.mxu0 %v1785
    %1787 = vmatprep.subr.mxu0 0.0
    %v1788 = vand.u32 %v87, 4294901760
    %1789 = vmatpush1.msra.mxu0 %v1788
    %1790 = vmatprep.subr.mxu0 0.0
    %v1791 = vand.u32 %v86, 4294901760
    %1792 = vmatpush1.msra.mxu0 %v1791
    %1793 = vmatprep.subr.mxu0 0.0
    %v1794 = vand.u32 %v85, 4294901760
    %1795 = vmatpush1.msra.mxu0 %v1794
    %1796 = vmatprep.subr.mxu0 0.0
    %v1797 = vand.u32 %v84, 4294901760
    %1798 = vmatpush1.msra.mxu0 %v1797
    %1799 = vmatprep.subr.mxu0 0.0
    %v1800 = vand.u32 %v83, 4294901760
    %1801 = vmatpush1.msra.mxu0 %v1800
    %1802 = vmatprep.subr.mxu0 0.0
    %v1803 = vand.u32 %v82, 4294901760
    %1804 = vmatpush1.msra.mxu0 %v1803
    %1805 = vmatprep.subr.mxu0 0.0
    %v1806 = vand.u32 %v81, 4294901760
    %1807 = vmatpush1.msra.mxu0 %v1806
    %1808 = vmatprep.subr.mxu0 0.0
    %v1809 = vand.u32 %v80, 4294901760
    %1810 = vmatpush1.msra.mxu0 %v1809
    %1811 = vmatprep.subr.mxu0 0.0
    %v1812 = vand.u32 %v79, 4294901760
    %1813 = vmatpush1.msra.mxu0 %v1812
    %1814 = vmatprep.subr.mxu0 0.0
    %v1815 = vand.u32 %v78, 4294901760
    %1816 = vmatpush1.msra.mxu0 %v1815
    %1817 = vmatprep.subr.mxu0 0.0
    %v1818 = vand.u32 %v109, 4294901760
    %1819 = vmatpush2.msra.mxu0 %v1818
    %1820 = vmatprep.subr.mxu0 0.0
    %v1821 = vand.u32 %v108, 4294901760
    %1822 = vmatpush2.msra.mxu0 %v1821
    %1823 = vmatprep.subr.mxu0 0.0
    %v1824 = vand.u32 %v107, 4294901760
    %1825 = vmatpush2.msra.mxu0 %v1824
    %1826 = vmatprep.subr.mxu0 0.0
    %v1827 = vand.u32 %v106, 4294901760
    %1828 = vmatpush2.msra.mxu0 %v1827
    %1829 = vmatprep.subr.mxu0 0.0
    %v1830 = vand.u32 %v105, 4294901760
    %1831 = vmatpush2.msra.mxu0 %v1830
    %1832 = vmatprep.subr.mxu0 0.0
    %v1833 = vand.u32 %v104, 4294901760
    %1834 = vmatpush2.msra.mxu0 %v1833
    %1835 = vmatprep.subr.mxu0 0.0
    %v1836 = vand.u32 %v103, 4294901760
    %1837 = vmatpush2.msra.mxu0 %v1836
    %1838 = vmatprep.subr.mxu0 0.0
    %v1839 = vand.u32 %v102, 4294901760
    %1840 = vmatpush2.msra.mxu0 %v1839
    %1841 = vmatprep.subr.mxu0 0.0
    %v1842 = vand.u32 %v101, 4294901760
    %1843 = vmatpush2.msra.mxu0 %v1842
    %1844 = vmatprep.subr.mxu0 0.0
    %v1845 = vand.u32 %v100, 4294901760
    %1846 = vmatpush2.msra.mxu0 %v1845
    %1847 = vmatprep.subr.mxu0 0.0
    %v1848 = vand.u32 %v99, 4294901760
    %1849 = vmatpush2.msra.mxu0 %v1848
    %1850 = vmatprep.subr.mxu0 0.0
    %v1851 = vand.u32 %v98, 4294901760
    %1852 = vmatpush2.msra.mxu0 %v1851
    %1853 = vmatprep.subr.mxu0 0.0
    %v1854 = vand.u32 %v97, 4294901760
    %1855 = vmatpush2.msra.mxu0 %v1854
    %1856 = vmatprep.subr.mxu0 0.0
    %v1857 = vand.u32 %v96, 4294901760
    %1858 = vmatpush2.msra.mxu0 %v1857
    %1859 = vmatprep.subr.mxu0 0.0
    %v1860 = vand.u32 %v95, 4294901760
    %1861 = vmatpush2.msra.mxu0 %v1860
    %1862 = vmatprep.subr.mxu0 0.0
    %v1863 = vand.u32 %v94, 4294901760
    %1864 = vmatpush2.msra.mxu0 %v1863
    %v1865 = vand.u32 %v43, 4294901760
    %1866 = vmatprep.mubr.f32.mxu0 %v1865
    %v1867 = vand.u32 %v42, 4294901760
    %1868 = vmatmul.mubr.f32.gmra.mxu0 %v1867
    %v1869 = vpop.f32.mrf.mxu0
    %v1870 = vadd.f32 %v1766, %v1869
    %v1871 = vpop.f32.mrf.mxu0
    %1872 = vdwg.mxu0
    %1873 = vmatprep.subr.mxu0 0.0
    %v1874 = vand.u32 %v125, 4294901760
    %1875 = vmatpush1.msra.mxu0 %v1874
    %1876 = vmatprep.subr.mxu0 0.0
    %v1877 = vand.u32 %v124, 4294901760
    %1878 = vmatpush1.msra.mxu0 %v1877
    %1879 = vmatprep.subr.mxu0 0.0
    %v1880 = vand.u32 %v123, 4294901760
    %1881 = vmatpush1.msra.mxu0 %v1880
    %1882 = vmatprep.subr.mxu0 0.0
    %v1883 = vand.u32 %v122, 4294901760
    %1884 = vmatpush1.msra.mxu0 %v1883
    %1885 = vmatprep.subr.mxu0 0.0
    %v1886 = vand.u32 %v121, 4294901760
    %1887 = vmatpush1.msra.mxu0 %v1886
    %1888 = vmatprep.subr.mxu0 0.0
    %v1889 = vand.u32 %v120, 4294901760
    %1890 = vmatpush1.msra.mxu0 %v1889
    %1891 = vmatprep.subr.mxu0 0.0
    %v1892 = vand.u32 %v119, 4294901760
    %1893 = vmatpush1.msra.mxu0 %v1892
    %1894 = vmatprep.subr.mxu0 0.0
    %v1895 = vand.u32 %v118, 4294901760
    %1896 = vmatpush1.msra.mxu0 %v1895
    %1897 = vmatprep.subr.mxu0 0.0
    %v1898 = vand.u32 %v117, 4294901760
    %1899 = vmatpush1.msra.mxu0 %v1898
    %1900 = vmatprep.subr.mxu0 0.0
    %v1901 = vand.u32 %v116, 4294901760
    %1902 = vmatpush1.msra.mxu0 %v1901
    %1903 = vmatprep.subr.mxu0 0.0
    %v1904 = vand.u32 %v115, 4294901760
    %1905 = vmatpush1.msra.mxu0 %v1904
    %1906 = vmatprep.subr.mxu0 0.0
    %v1907 = vand.u32 %v114, 4294901760
    %1908 = vmatpush1.msra.mxu0 %v1907
    %1909 = vmatprep.subr.mxu0 0.0
    %v1910 = vand.u32 %v113, 4294901760
    %1911 = vmatpush1.msra.mxu0 %v1910
    %1912 = vmatprep.subr.mxu0 0.0
    %v1913 = vand.u32 %v112, 4294901760
    %1914 = vmatpush1.msra.mxu0 %v1913
    %1915 = vmatprep.subr.mxu0 0.0
    %v1916 = vand.u32 %v111, 4294901760
    %1917 = vmatpush1.msra.mxu0 %v1916
    %1918 = vmatprep.subr.mxu0 0.0
    %v1919 = vand.u32 %v110, 4294901760
    %1920 = vmatpush1.msra.mxu0 %v1919
    %1921 = vmatprep.subr.mxu0 0.0
    %v1922 = vand.u32 %v141, 4294901760
    %1923 = vmatpush2.msra.mxu0 %v1922
    %1924 = vmatprep.subr.mxu0 0.0
    %v1925 = vand.u32 %v140, 4294901760
    %1926 = vmatpush2.msra.mxu0 %v1925
    %1927 = vmatprep.subr.mxu0 0.0
    %v1928 = vand.u32 %v139, 4294901760
    %1929 = vmatpush2.msra.mxu0 %v1928
    %1930 = vmatprep.subr.mxu0 0.0
    %v1931 = vand.u32 %v138, 4294901760
    %1932 = vmatpush2.msra.mxu0 %v1931
    %1933 = vmatprep.subr.mxu0 0.0
    %v1934 = vand.u32 %v137, 4294901760
    %1935 = vmatpush2.msra.mxu0 %v1934
    %1936 = vmatprep.subr.mxu0 0.0
    %v1937 = vand.u32 %v136, 4294901760
    %1938 = vmatpush2.msra.mxu0 %v1937
    %1939 = vmatprep.subr.mxu0 0.0
    %v1940 = vand.u32 %v135, 4294901760
    %1941 = vmatpush2.msra.mxu0 %v1940
    %1942 = vmatprep.subr.mxu0 0.0
    %v1943 = vand.u32 %v134, 4294901760
    %1944 = vmatpush2.msra.mxu0 %v1943
    %1945 = vmatprep.subr.mxu0 0.0
    %v1946 = vand.u32 %v133, 4294901760
    %1947 = vmatpush2.msra.mxu0 %v1946
    %1948 = vmatprep.subr.mxu0 0.0
    %v1949 = vand.u32 %v132, 4294901760
    %1950 = vmatpush2.msra.mxu0 %v1949
    %1951 = vmatprep.subr.mxu0 0.0
    %v1952 = vand.u32 %v131, 4294901760
    %1953 = vmatpush2.msra.mxu0 %v1952
    %1954 = vmatprep.subr.mxu0 0.0
    %v1955 = vand.u32 %v130, 4294901760
    %1956 = vmatpush2.msra.mxu0 %v1955
    %1957 = vmatprep.subr.mxu0 0.0
    %v1958 = vand.u32 %v129, 4294901760
    %1959 = vmatpush2.msra.mxu0 %v1958
    %1960 = vmatprep.subr.mxu0 0.0
    %v1961 = vand.u32 %v128, 4294901760
    %1962 = vmatpush2.msra.mxu0 %v1961
    %1963 = vmatprep.subr.mxu0 0.0
    %v1964 = vand.u32 %v127, 4294901760
    %1965 = vmatpush2.msra.mxu0 %v1964
    %1966 = vmatprep.subr.mxu0 0.0
    %v1967 = vand.u32 %v126, 4294901760
    %1968 = vmatpush2.msra.mxu0 %v1967
    %v1969 = vand.u32 %v45, 4294901760
    %v1970 = vsub.f32 %v45, %v1969
    %v1971 = vand.u32 %v1970, 4294901760
    %v1972 = vsub.f32 %v1970, %v1971
    %v1973 = vand.u32 %v1972, 4294901760
    %1974 = vmatprep.mubr.f32.mxu0 %v1973
    %v1975 = vand.u32 %v44, 4294901760
    %v1976 = vsub.f32 %v44, %v1975
    %v1977 = vand.u32 %v1976, 4294901760
    %v1978 = vsub.f32 %v1976, %v1977
    %v1979 = vand.u32 %v1978, 4294901760
    %1980 = vmatmul.mubr.f32.gmra.mxu0 %v1979
    %v1981 = vpop.f32.mrf.mxu0
    %v1982 = vadd.f32 %v1870, %v1981
    %v1983 = vpop.f32.mrf.mxu0
    %1984 = vdwg.mxu0
    %1985 = vmatprep.subr.mxu0 0.0
    %v1986 = vand.u32 %v125, 4294901760
    %v1987 = vsub.f32 %v125, %v1986
    %v1988 = vand.u32 %v1987, 4294901760
    %v1989 = vsub.f32 %v1987, %v1988
    %v1990 = vand.u32 %v1989, 4294901760
    %1991 = vmatpush1.msra.mxu0 %v1990
    %1992 = vmatprep.subr.mxu0 0.0
    %v1993 = vand.u32 %v124, 4294901760
    %v1994 = vsub.f32 %v124, %v1993
    %v1995 = vand.u32 %v1994, 4294901760
    %v1996 = vsub.f32 %v1994, %v1995
    %v1997 = vand.u32 %v1996, 4294901760
    %1998 = vmatpush1.msra.mxu0 %v1997
    %1999 = vmatprep.subr.mxu0 0.0
    %v2000 = vand.u32 %v123, 4294901760
    %v2001 = vsub.f32 %v123, %v2000
    %v2002 = vand.u32 %v2001, 4294901760
    %v2003 = vsub.f32 %v2001, %v2002
    %v2004 = vand.u32 %v2003, 4294901760
    %2005 = vmatpush1.msra.mxu0 %v2004
    %2006 = vmatprep.subr.mxu0 0.0
    %v2007 = vand.u32 %v122, 4294901760
    %v2008 = vsub.f32 %v122, %v2007
    %v2009 = vand.u32 %v2008, 4294901760
    %v2010 = vsub.f32 %v2008, %v2009
    %v2011 = vand.u32 %v2010, 4294901760
    %2012 = vmatpush1.msra.mxu0 %v2011
    %2013 = vmatprep.subr.mxu0 0.0
    %v2014 = vand.u32 %v121, 4294901760
    %v2015 = vsub.f32 %v121, %v2014
    %v2016 = vand.u32 %v2015, 4294901760
    %v2017 = vsub.f32 %v2015, %v2016
    %v2018 = vand.u32 %v2017, 4294901760
    %2019 = vmatpush1.msra.mxu0 %v2018
    %2020 = vmatprep.subr.mxu0 0.0
    %v2021 = vand.u32 %v120, 4294901760
    %v2022 = vsub.f32 %v120, %v2021
    %v2023 = vand.u32 %v2022, 4294901760
    %v2024 = vsub.f32 %v2022, %v2023
    %v2025 = vand.u32 %v2024, 4294901760
    %2026 = vmatpush1.msra.mxu0 %v2025
    %2027 = vmatprep.subr.mxu0 0.0
    %v2028 = vand.u32 %v119, 4294901760
    %v2029 = vsub.f32 %v119, %v2028
    %v2030 = vand.u32 %v2029, 4294901760
    %v2031 = vsub.f32 %v2029, %v2030
    %v2032 = vand.u32 %v2031, 4294901760
    %2033 = vmatpush1.msra.mxu0 %v2032
    %2034 = vmatprep.subr.mxu0 0.0
    %v2035 = vand.u32 %v118, 4294901760
    %v2036 = vsub.f32 %v118, %v2035
    %v2037 = vand.u32 %v2036, 4294901760
    %v2038 = vsub.f32 %v2036, %v2037
    %v2039 = vand.u32 %v2038, 4294901760
    %2040 = vmatpush1.msra.mxu0 %v2039
    %2041 = vmatprep.subr.mxu0 0.0
    %v2042 = vand.u32 %v117, 4294901760
    %v2043 = vsub.f32 %v117, %v2042
    %v2044 = vand.u32 %v2043, 4294901760
    %v2045 = vsub.f32 %v2043, %v2044
    %v2046 = vand.u32 %v2045, 4294901760
    %2047 = vmatpush1.msra.mxu0 %v2046
    %2048 = vmatprep.subr.mxu0 0.0
    %v2049 = vand.u32 %v116, 4294901760
    %v2050 = vsub.f32 %v116, %v2049
    %v2051 = vand.u32 %v2050, 4294901760
    %v2052 = vsub.f32 %v2050, %v2051
    %v2053 = vand.u32 %v2052, 4294901760
    %2054 = vmatpush1.msra.mxu0 %v2053
    %2055 = vmatprep.subr.mxu0 0.0
    %v2056 = vand.u32 %v115, 4294901760
    %v2057 = vsub.f32 %v115, %v2056
    %v2058 = vand.u32 %v2057, 4294901760
    %v2059 = vsub.f32 %v2057, %v2058
    %v2060 = vand.u32 %v2059, 4294901760
    %2061 = vmatpush1.msra.mxu0 %v2060
    %2062 = vmatprep.subr.mxu0 0.0
    %v2063 = vand.u32 %v114, 4294901760
    %v2064 = vsub.f32 %v114, %v2063
    %v2065 = vand.u32 %v2064, 4294901760
    %v2066 = vsub.f32 %v2064, %v2065
    %v2067 = vand.u32 %v2066, 4294901760
    %2068 = vmatpush1.msra.mxu0 %v2067
    %2069 = vmatprep.subr.mxu0 0.0
    %v2070 = vand.u32 %v113, 4294901760
    %v2071 = vsub.f32 %v113, %v2070
    %v2072 = vand.u32 %v2071, 4294901760
    %v2073 = vsub.f32 %v2071, %v2072
    %v2074 = vand.u32 %v2073, 4294901760
    %2075 = vmatpush1.msra.mxu0 %v2074
    %2076 = vmatprep.subr.mxu0 0.0
    %v2077 = vand.u32 %v112, 4294901760
    %v2078 = vsub.f32 %v112, %v2077
    %v2079 = vand.u32 %v2078, 4294901760
    %v2080 = vsub.f32 %v2078, %v2079
    %v2081 = vand.u32 %v2080, 4294901760
    %2082 = vmatpush1.msra.mxu0 %v2081
    %2083 = vmatprep.subr.mxu0 0.0
    %v2084 = vand.u32 %v111, 4294901760
    %v2085 = vsub.f32 %v111, %v2084
    %v2086 = vand.u32 %v2085, 4294901760
    %v2087 = vsub.f32 %v2085, %v2086
    %v2088 = vand.u32 %v2087, 4294901760
    %2089 = vmatpush1.msra.mxu0 %v2088
    %2090 = vmatprep.subr.mxu0 0.0
    %v2091 = vand.u32 %v110, 4294901760
    %v2092 = vsub.f32 %v110, %v2091
    %v2093 = vand.u32 %v2092, 4294901760
    %v2094 = vsub.f32 %v2092, %v2093
    %v2095 = vand.u32 %v2094, 4294901760
    %2096 = vmatpush1.msra.mxu0 %v2095
    %2097 = vmatprep.subr.mxu0 0.0
    %v2098 = vand.u32 %v141, 4294901760
    %v2099 = vsub.f32 %v141, %v2098
    %v2100 = vand.u32 %v2099, 4294901760
    %v2101 = vsub.f32 %v2099, %v2100
    %v2102 = vand.u32 %v2101, 4294901760
    %2103 = vmatpush2.msra.mxu0 %v2102
    %2104 = vmatprep.subr.mxu0 0.0
    %v2105 = vand.u32 %v140, 4294901760
    %v2106 = vsub.f32 %v140, %v2105
    %v2107 = vand.u32 %v2106, 4294901760
    %v2108 = vsub.f32 %v2106, %v2107
    %v2109 = vand.u32 %v2108, 4294901760
    %2110 = vmatpush2.msra.mxu0 %v2109
    %2111 = vmatprep.subr.mxu0 0.0
    %v2112 = vand.u32 %v139, 4294901760
    %v2113 = vsub.f32 %v139, %v2112
    %v2114 = vand.u32 %v2113, 4294901760
    %v2115 = vsub.f32 %v2113, %v2114
    %v2116 = vand.u32 %v2115, 4294901760
    %2117 = vmatpush2.msra.mxu0 %v2116
    %2118 = vmatprep.subr.mxu0 0.0
    %v2119 = vand.u32 %v138, 4294901760
    %v2120 = vsub.f32 %v138, %v2119
    %v2121 = vand.u32 %v2120, 4294901760
    %v2122 = vsub.f32 %v2120, %v2121
    %v2123 = vand.u32 %v2122, 4294901760
    %2124 = vmatpush2.msra.mxu0 %v2123
    %2125 = vmatprep.subr.mxu0 0.0
    %v2126 = vand.u32 %v137, 4294901760
    %v2127 = vsub.f32 %v137, %v2126
    %v2128 = vand.u32 %v2127, 4294901760
    %v2129 = vsub.f32 %v2127, %v2128
    %v2130 = vand.u32 %v2129, 4294901760
    %2131 = vmatpush2.msra.mxu0 %v2130
    %2132 = vmatprep.subr.mxu0 0.0
    %v2133 = vand.u32 %v136, 4294901760
    %v2134 = vsub.f32 %v136, %v2133
    %v2135 = vand.u32 %v2134, 4294901760
    %v2136 = vsub.f32 %v2134, %v2135
    %v2137 = vand.u32 %v2136, 4294901760
    %2138 = vmatpush2.msra.mxu0 %v2137
    %2139 = vmatprep.subr.mxu0 0.0
    %v2140 = vand.u32 %v135, 4294901760
    %v2141 = vsub.f32 %v135, %v2140
    %v2142 = vand.u32 %v2141, 4294901760
    %v2143 = vsub.f32 %v2141, %v2142
    %v2144 = vand.u32 %v2143, 4294901760
    %2145 = vmatpush2.msra.mxu0 %v2144
    %2146 = vmatprep.subr.mxu0 0.0
    %v2147 = vand.u32 %v134, 4294901760
    %v2148 = vsub.f32 %v134, %v2147
    %v2149 = vand.u32 %v2148, 4294901760
    %v2150 = vsub.f32 %v2148, %v2149
    %v2151 = vand.u32 %v2150, 4294901760
    %2152 = vmatpush2.msra.mxu0 %v2151
    %2153 = vmatprep.subr.mxu0 0.0
    %v2154 = vand.u32 %v133, 4294901760
    %v2155 = vsub.f32 %v133, %v2154
    %v2156 = vand.u32 %v2155, 4294901760
    %v2157 = vsub.f32 %v2155, %v2156
    %v2158 = vand.u32 %v2157, 4294901760
    %2159 = vmatpush2.msra.mxu0 %v2158
    %2160 = vmatprep.subr.mxu0 0.0
    %v2161 = vand.u32 %v132, 4294901760
    %v2162 = vsub.f32 %v132, %v2161
    %v2163 = vand.u32 %v2162, 4294901760
    %v2164 = vsub.f32 %v2162, %v2163
    %v2165 = vand.u32 %v2164, 4294901760
    %2166 = vmatpush2.msra.mxu0 %v2165
    %2167 = vmatprep.subr.mxu0 0.0
    %v2168 = vand.u32 %v131, 4294901760
    %v2169 = vsub.f32 %v131, %v2168
    %v2170 = vand.u32 %v2169, 4294901760
    %v2171 = vsub.f32 %v2169, %v2170
    %v2172 = vand.u32 %v2171, 4294901760
    %2173 = vmatpush2.msra.mxu0 %v2172
    %2174 = vmatprep.subr.mxu0 0.0
    %v2175 = vand.u32 %v130, 4294901760
    %v2176 = vsub.f32 %v130, %v2175
    %v2177 = vand.u32 %v2176, 4294901760
    %v2178 = vsub.f32 %v2176, %v2177
    %v2179 = vand.u32 %v2178, 4294901760
    %2180 = vmatpush2.msra.mxu0 %v2179
    %2181 = vmatprep.subr.mxu0 0.0
    %v2182 = vand.u32 %v129, 4294901760
    %v2183 = vsub.f32 %v129, %v2182
    %v2184 = vand.u32 %v2183, 4294901760
    %v2185 = vsub.f32 %v2183, %v2184
    %v2186 = vand.u32 %v2185, 4294901760
    %2187 = vmatpush2.msra.mxu0 %v2186
    %2188 = vmatprep.subr.mxu0 0.0
    %v2189 = vand.u32 %v128, 4294901760
    %v2190 = vsub.f32 %v128, %v2189
    %v2191 = vand.u32 %v2190, 4294901760
    %v2192 = vsub.f32 %v2190, %v2191
    %v2193 = vand.u32 %v2192, 4294901760
    %2194 = vmatpush2.msra.mxu0 %v2193
    %2195 = vmatprep.subr.mxu0 0.0
    %v2196 = vand.u32 %v127, 4294901760
    %v2197 = vsub.f32 %v127, %v2196
    %v2198 = vand.u32 %v2197, 4294901760
    %v2199 = vsub.f32 %v2197, %v2198
    %v2200 = vand.u32 %v2199, 4294901760
    %2201 = vmatpush2.msra.mxu0 %v2200
    %2202 = vmatprep.subr.mxu0 0.0
    %v2203 = vand.u32 %v126, 4294901760
    %v2204 = vsub.f32 %v126, %v2203
    %v2205 = vand.u32 %v2204, 4294901760
    %v2206 = vsub.f32 %v2204, %v2205
    %v2207 = vand.u32 %v2206, 4294901760
    %2208 = vmatpush2.msra.mxu0 %v2207
    %v2209 = vand.u32 %v45, 4294901760
    %2210 = vmatprep.mubr.f32.mxu0 %v2209
    %v2211 = vand.u32 %v44, 4294901760
    %2212 = vmatmul.mubr.f32.gmra.mxu0 %v2211
    %v2213 = vpop.f32.mrf.mxu0
    %v2214 = vadd.f32 %v1982, %v2213
    %v2215 = vpop.f32.mrf.mxu0
    %2216 = vdwg.mxu0
    %2217 = vmatprep.subr.mxu0 0.0
    %v2218 = vand.u32 %v125, 4294901760
    %v2219 = vsub.f32 %v125, %v2218
    %2220 = vmatpush1.msra.mxu0 %v2219
    %2221 = vmatprep.subr.mxu0 0.0
    %v2222 = vand.u32 %v124, 4294901760
    %v2223 = vsub.f32 %v124, %v2222
    %2224 = vmatpush1.msra.mxu0 %v2223
    %2225 = vmatprep.subr.mxu0 0.0
    %v2226 = vand.u32 %v123, 4294901760
    %v2227 = vsub.f32 %v123, %v2226
    %2228 = vmatpush1.msra.mxu0 %v2227
    %2229 = vmatprep.subr.mxu0 0.0
    %v2230 = vand.u32 %v122, 4294901760
    %v2231 = vsub.f32 %v122, %v2230
    %2232 = vmatpush1.msra.mxu0 %v2231
    %2233 = vmatprep.subr.mxu0 0.0
    %v2234 = vand.u32 %v121, 4294901760
    %v2235 = vsub.f32 %v121, %v2234
    %2236 = vmatpush1.msra.mxu0 %v2235
    %2237 = vmatprep.subr.mxu0 0.0
    %v2238 = vand.u32 %v120, 4294901760
    %v2239 = vsub.f32 %v120, %v2238
    %2240 = vmatpush1.msra.mxu0 %v2239
    %2241 = vmatprep.subr.mxu0 0.0
    %v2242 = vand.u32 %v119, 4294901760
    %v2243 = vsub.f32 %v119, %v2242
    %2244 = vmatpush1.msra.mxu0 %v2243
    %2245 = vmatprep.subr.mxu0 0.0
    %v2246 = vand.u32 %v118, 4294901760
    %v2247 = vsub.f32 %v118, %v2246
    %2248 = vmatpush1.msra.mxu0 %v2247
    %2249 = vmatprep.subr.mxu0 0.0
    %v2250 = vand.u32 %v117, 4294901760
    %v2251 = vsub.f32 %v117, %v2250
    %2252 = vmatpush1.msra.mxu0 %v2251
    %2253 = vmatprep.subr.mxu0 0.0
    %v2254 = vand.u32 %v116, 4294901760
    %v2255 = vsub.f32 %v116, %v2254
    %2256 = vmatpush1.msra.mxu0 %v2255
    %2257 = vmatprep.subr.mxu0 0.0
    %v2258 = vand.u32 %v115, 4294901760
    %v2259 = vsub.f32 %v115, %v2258
    %2260 = vmatpush1.msra.mxu0 %v2259
    %2261 = vmatprep.subr.mxu0 0.0
    %v2262 = vand.u32 %v114, 4294901760
    %v2263 = vsub.f32 %v114, %v2262
    %2264 = vmatpush1.msra.mxu0 %v2263
    %2265 = vmatprep.subr.mxu0 0.0
    %v2266 = vand.u32 %v113, 4294901760
    %v2267 = vsub.f32 %v113, %v2266
    %2268 = vmatpush1.msra.mxu0 %v2267
    %2269 = vmatprep.subr.mxu0 0.0
    %v2270 = vand.u32 %v112, 4294901760
    %v2271 = vsub.f32 %v112, %v2270
    %2272 = vmatpush1.msra.mxu0 %v2271
    %2273 = vmatprep.subr.mxu0 0.0
    %v2274 = vand.u32 %v111, 4294901760
    %v2275 = vsub.f32 %v111, %v2274
    %2276 = vmatpush1.msra.mxu0 %v2275
    %2277 = vmatprep.subr.mxu0 0.0
    %v2278 = vand.u32 %v110, 4294901760
    %v2279 = vsub.f32 %v110, %v2278
    %2280 = vmatpush1.msra.mxu0 %v2279
    %2281 = vmatprep.subr.mxu0 0.0
    %v2282 = vand.u32 %v141, 4294901760
    %v2283 = vsub.f32 %v141, %v2282
    %2284 = vmatpush2.msra.mxu0 %v2283
    %2285 = vmatprep.subr.mxu0 0.0
    %v2286 = vand.u32 %v140, 4294901760
    %v2287 = vsub.f32 %v140, %v2286
    %2288 = vmatpush2.msra.mxu0 %v2287
    %2289 = vmatprep.subr.mxu0 0.0
    %v2290 = vand.u32 %v139, 4294901760
    %v2291 = vsub.f32 %v139, %v2290
    %2292 = vmatpush2.msra.mxu0 %v2291
    %2293 = vmatprep.subr.mxu0 0.0
    %v2294 = vand.u32 %v138, 4294901760
    %v2295 = vsub.f32 %v138, %v2294
    %2296 = vmatpush2.msra.mxu0 %v2295
    %2297 = vmatprep.subr.mxu0 0.0
    %v2298 = vand.u32 %v137, 4294901760
    %v2299 = vsub.f32 %v137, %v2298
    %2300 = vmatpush2.msra.mxu0 %v2299
    %2301 = vmatprep.subr.mxu0 0.0
    %v2302 = vand.u32 %v136, 4294901760
    %v2303 = vsub.f32 %v136, %v2302
    %2304 = vmatpush2.msra.mxu0 %v2303
    %2305 = vmatprep.subr.mxu0 0.0
    %v2306 = vand.u32 %v135, 4294901760
    %v2307 = vsub.f32 %v135, %v2306
    %2308 = vmatpush2.msra.mxu0 %v2307
    %2309 = vmatprep.subr.mxu0 0.0
    %v2310 = vand.u32 %v134, 4294901760
    %v2311 = vsub.f32 %v134, %v2310
    %2312 = vmatpush2.msra.mxu0 %v2311
    %2313 = vmatprep.subr.mxu0 0.0
    %v2314 = vand.u32 %v133, 4294901760
    %v2315 = vsub.f32 %v133, %v2314
    %2316 = vmatpush2.msra.mxu0 %v2315
    %2317 = vmatprep.subr.mxu0 0.0
    %v2318 = vand.u32 %v132, 4294901760
    %v2319 = vsub.f32 %v132, %v2318
    %2320 = vmatpush2.msra.mxu0 %v2319
    %2321 = vmatprep.subr.mxu0 0.0
    %v2322 = vand.u32 %v131, 4294901760
    %v2323 = vsub.f32 %v131, %v2322
    %2324 = vmatpush2.msra.mxu0 %v2323
    %2325 = vmatprep.subr.mxu0 0.0
    %v2326 = vand.u32 %v130, 4294901760
    %v2327 = vsub.f32 %v130, %v2326
    %2328 = vmatpush2.msra.mxu0 %v2327
    %2329 = vmatprep.subr.mxu0 0.0
    %v2330 = vand.u32 %v129, 4294901760
    %v2331 = vsub.f32 %v129, %v2330
    %2332 = vmatpush2.msra.mxu0 %v2331
    %2333 = vmatprep.subr.mxu0 0.0
    %v2334 = vand.u32 %v128, 4294901760
    %v2335 = vsub.f32 %v128, %v2334
    %2336 = vmatpush2.msra.mxu0 %v2335
    %2337 = vmatprep.subr.mxu0 0.0
    %v2338 = vand.u32 %v127, 4294901760
    %v2339 = vsub.f32 %v127, %v2338
    %2340 = vmatpush2.msra.mxu0 %v2339
    %2341 = vmatprep.subr.mxu0 0.0
    %v2342 = vand.u32 %v126, 4294901760
    %v2343 = vsub.f32 %v126, %v2342
    %2344 = vmatpush2.msra.mxu0 %v2343
    %v2345 = vand.u32 %v45, 4294901760
    %v2346 = vsub.f32 %v45, %v2345
    %2347 = vmatprep.mubr.f32.mxu0 %v2346
    %v2348 = vand.u32 %v44, 4294901760
    %v2349 = vsub.f32 %v44, %v2348
    %2350 = vmatmul.mubr.f32.gmra.mxu0 %v2349
    %v2351 = vpop.f32.mrf.mxu0
    %v2352 = vadd.f32 %v2214, %v2351
    %v2353 = vpop.f32.mrf.mxu0
    %2354 = vdwg.mxu0
    %2355 = vmatprep.subr.mxu0 0.0
    %v2356 = vand.u32 %v125, 4294901760
    %2357 = vmatpush1.msra.mxu0 %v2356
    %2358 = vmatprep.subr.mxu0 0.0
    %v2359 = vand.u32 %v124, 4294901760
    %2360 = vmatpush1.msra.mxu0 %v2359
    %2361 = vmatprep.subr.mxu0 0.0
    %v2362 = vand.u32 %v123, 4294901760
    %2363 = vmatpush1.msra.mxu0 %v2362
    %2364 = vmatprep.subr.mxu0 0.0
    %v2365 = vand.u32 %v122, 4294901760
    %2366 = vmatpush1.msra.mxu0 %v2365
    %2367 = vmatprep.subr.mxu0 0.0
    %v2368 = vand.u32 %v121, 4294901760
    %2369 = vmatpush1.msra.mxu0 %v2368
    %2370 = vmatprep.subr.mxu0 0.0
    %v2371 = vand.u32 %v120, 4294901760
    %2372 = vmatpush1.msra.mxu0 %v2371
    %2373 = vmatprep.subr.mxu0 0.0
    %v2374 = vand.u32 %v119, 4294901760
    %2375 = vmatpush1.msra.mxu0 %v2374
    %2376 = vmatprep.subr.mxu0 0.0
    %v2377 = vand.u32 %v118, 4294901760
    %2378 = vmatpush1.msra.mxu0 %v2377
    %2379 = vmatprep.subr.mxu0 0.0
    %v2380 = vand.u32 %v117, 4294901760
    %2381 = vmatpush1.msra.mxu0 %v2380
    %2382 = vmatprep.subr.mxu0 0.0
    %v2383 = vand.u32 %v116, 4294901760
    %2384 = vmatpush1.msra.mxu0 %v2383
    %2385 = vmatprep.subr.mxu0 0.0
    %v2386 = vand.u32 %v115, 4294901760
    %2387 = vmatpush1.msra.mxu0 %v2386
    %2388 = vmatprep.subr.mxu0 0.0
    %v2389 = vand.u32 %v114, 4294901760
    %2390 = vmatpush1.msra.mxu0 %v2389
    %2391 = vmatprep.subr.mxu0 0.0
    %v2392 = vand.u32 %v113, 4294901760
    %2393 = vmatpush1.msra.mxu0 %v2392
    %2394 = vmatprep.subr.mxu0 0.0
    %v2395 = vand.u32 %v112, 4294901760
    %2396 = vmatpush1.msra.mxu0 %v2395
    %2397 = vmatprep.subr.mxu0 0.0
    %v2398 = vand.u32 %v111, 4294901760
    %2399 = vmatpush1.msra.mxu0 %v2398
    %2400 = vmatprep.subr.mxu0 0.0
    %v2401 = vand.u32 %v110, 4294901760
    %2402 = vmatpush1.msra.mxu0 %v2401
    %2403 = vmatprep.subr.mxu0 0.0
    %v2404 = vand.u32 %v141, 4294901760
    %2405 = vmatpush2.msra.mxu0 %v2404
    %2406 = vmatprep.subr.mxu0 0.0
    %v2407 = vand.u32 %v140, 4294901760
    %2408 = vmatpush2.msra.mxu0 %v2407
    %2409 = vmatprep.subr.mxu0 0.0
    %v2410 = vand.u32 %v139, 4294901760
    %2411 = vmatpush2.msra.mxu0 %v2410
    %2412 = vmatprep.subr.mxu0 0.0
    %v2413 = vand.u32 %v138, 4294901760
    %2414 = vmatpush2.msra.mxu0 %v2413
    %2415 = vmatprep.subr.mxu0 0.0
    %v2416 = vand.u32 %v137, 4294901760
    %2417 = vmatpush2.msra.mxu0 %v2416
    %2418 = vmatprep.subr.mxu0 0.0
    %v2419 = vand.u32 %v136, 4294901760
    %2420 = vmatpush2.msra.mxu0 %v2419
    %2421 = vmatprep.subr.mxu0 0.0
    %v2422 = vand.u32 %v135, 4294901760
    %2423 = vmatpush2.msra.mxu0 %v2422
    %2424 = vmatprep.subr.mxu0 0.0
    %v2425 = vand.u32 %v134, 4294901760
    %2426 = vmatpush2.msra.mxu0 %v2425
    %2427 = vmatprep.subr.mxu0 0.0
    %v2428 = vand.u32 %v133, 4294901760
    %2429 = vmatpush2.msra.mxu0 %v2428
    %2430 = vmatprep.subr.mxu0 0.0
    %v2431 = vand.u32 %v132, 4294901760
    %2432 = vmatpush2.msra.mxu0 %v2431
    %2433 = vmatprep.subr.mxu0 0.0
    %v2434 = vand.u32 %v131, 4294901760
    %2435 = vmatpush2.msra.mxu0 %v2434
    %2436 = vmatprep.subr.mxu0 0.0
    %v2437 = vand.u32 %v130, 4294901760
    %2438 = vmatpush2.msra.mxu0 %v2437
    %2439 = vmatprep.subr.mxu0 0.0
    %v2440 = vand.u32 %v129, 4294901760
    %2441 = vmatpush2.msra.mxu0 %v2440
    %2442 = vmatprep.subr.mxu0 0.0
    %v2443 = vand.u32 %v128, 4294901760
    %2444 = vmatpush2.msra.mxu0 %v2443
    %2445 = vmatprep.subr.mxu0 0.0
    %v2446 = vand.u32 %v127, 4294901760
    %2447 = vmatpush2.msra.mxu0 %v2446
    %2448 = vmatprep.subr.mxu0 0.0
    %v2449 = vand.u32 %v126, 4294901760
    %2450 = vmatpush2.msra.mxu0 %v2449
    %v2451 = vand.u32 %v45, 4294901760
    %v2452 = vsub.f32 %v45, %v2451
    %v2453 = vand.u32 %v2452, 4294901760
    %2454 = vmatprep.mubr.f32.mxu0 %v2453
    %v2455 = vand.u32 %v44, 4294901760
    %v2456 = vsub.f32 %v44, %v2455
    %v2457 = vand.u32 %v2456, 4294901760
    %2458 = vmatmul.mubr.f32.gmra.mxu0 %v2457
    %v2459 = vpop.f32.mrf.mxu0
    %v2460 = vadd.f32 %v2352, %v2459
    %v2461 = vpop.f32.mrf.mxu0
    %2462 = vdwg.mxu0
    %2463 = vmatprep.subr.mxu0 0.0
    %v2464 = vand.u32 %v125, 4294901760
    %v2465 = vsub.f32 %v125, %v2464
    %v2466 = vand.u32 %v2465, 4294901760
    %2467 = vmatpush1.msra.mxu0 %v2466
    %2468 = vmatprep.subr.mxu0 0.0
    %v2469 = vand.u32 %v124, 4294901760
    %v2470 = vsub.f32 %v124, %v2469
    %v2471 = vand.u32 %v2470, 4294901760
    %2472 = vmatpush1.msra.mxu0 %v2471
    %2473 = vmatprep.subr.mxu0 0.0
    %v2474 = vand.u32 %v123, 4294901760
    %v2475 = vsub.f32 %v123, %v2474
    %v2476 = vand.u32 %v2475, 4294901760
    %2477 = vmatpush1.msra.mxu0 %v2476
    %2478 = vmatprep.subr.mxu0 0.0
    %v2479 = vand.u32 %v122, 4294901760
    %v2480 = vsub.f32 %v122, %v2479
    %v2481 = vand.u32 %v2480, 4294901760
    %2482 = vmatpush1.msra.mxu0 %v2481
    %2483 = vmatprep.subr.mxu0 0.0
    %v2484 = vand.u32 %v121, 4294901760
    %v2485 = vsub.f32 %v121, %v2484
    %v2486 = vand.u32 %v2485, 4294901760
    %2487 = vmatpush1.msra.mxu0 %v2486
    %2488 = vmatprep.subr.mxu0 0.0
    %v2489 = vand.u32 %v120, 4294901760
    %v2490 = vsub.f32 %v120, %v2489
    %v2491 = vand.u32 %v2490, 4294901760
    %2492 = vmatpush1.msra.mxu0 %v2491
    %2493 = vmatprep.subr.mxu0 0.0
    %v2494 = vand.u32 %v119, 4294901760
    %v2495 = vsub.f32 %v119, %v2494
    %v2496 = vand.u32 %v2495, 4294901760
    %2497 = vmatpush1.msra.mxu0 %v2496
    %2498 = vmatprep.subr.mxu0 0.0
    %v2499 = vand.u32 %v118, 4294901760
    %v2500 = vsub.f32 %v118, %v2499
    %v2501 = vand.u32 %v2500, 4294901760
    %2502 = vmatpush1.msra.mxu0 %v2501
    %2503 = vmatprep.subr.mxu0 0.0
    %v2504 = vand.u32 %v117, 4294901760
    %v2505 = vsub.f32 %v117, %v2504
    %v2506 = vand.u32 %v2505, 4294901760
    %2507 = vmatpush1.msra.mxu0 %v2506
    %2508 = vmatprep.subr.mxu0 0.0
    %v2509 = vand.u32 %v116, 4294901760
    %v2510 = vsub.f32 %v116, %v2509
    %v2511 = vand.u32 %v2510, 4294901760
    %2512 = vmatpush1.msra.mxu0 %v2511
    %2513 = vmatprep.subr.mxu0 0.0
    %v2514 = vand.u32 %v115, 4294901760
    %v2515 = vsub.f32 %v115, %v2514
    %v2516 = vand.u32 %v2515, 4294901760
    %2517 = vmatpush1.msra.mxu0 %v2516
    %2518 = vmatprep.subr.mxu0 0.0
    %v2519 = vand.u32 %v114, 4294901760
    %v2520 = vsub.f32 %v114, %v2519
    %v2521 = vand.u32 %v2520, 4294901760
    %2522 = vmatpush1.msra.mxu0 %v2521
    %2523 = vmatprep.subr.mxu0 0.0
    %v2524 = vand.u32 %v113, 4294901760
    %v2525 = vsub.f32 %v113, %v2524
    %v2526 = vand.u32 %v2525, 4294901760
    %2527 = vmatpush1.msra.mxu0 %v2526
    %2528 = vmatprep.subr.mxu0 0.0
    %v2529 = vand.u32 %v112, 4294901760
    %v2530 = vsub.f32 %v112, %v2529
    %v2531 = vand.u32 %v2530, 4294901760
    %2532 = vmatpush1.msra.mxu0 %v2531
    %2533 = vmatprep.subr.mxu0 0.0
    %v2534 = vand.u32 %v111, 4294901760
    %v2535 = vsub.f32 %v111, %v2534
    %v2536 = vand.u32 %v2535, 4294901760
    %2537 = vmatpush1.msra.mxu0 %v2536
    %2538 = vmatprep.subr.mxu0 0.0
    %v2539 = vand.u32 %v110, 4294901760
    %v2540 = vsub.f32 %v110, %v2539
    %v2541 = vand.u32 %v2540, 4294901760
    %2542 = vmatpush1.msra.mxu0 %v2541
    %2543 = vmatprep.subr.mxu0 0.0
    %v2544 = vand.u32 %v141, 4294901760
    %v2545 = vsub.f32 %v141, %v2544
    %v2546 = vand.u32 %v2545, 4294901760
    %2547 = vmatpush2.msra.mxu0 %v2546
    %2548 = vmatprep.subr.mxu0 0.0
    %v2549 = vand.u32 %v140, 4294901760
    %v2550 = vsub.f32 %v140, %v2549
    %v2551 = vand.u32 %v2550, 4294901760
    %2552 = vmatpush2.msra.mxu0 %v2551
    %2553 = vmatprep.subr.mxu0 0.0
    %v2554 = vand.u32 %v139, 4294901760
    %v2555 = vsub.f32 %v139, %v2554
    %v2556 = vand.u32 %v2555, 4294901760
    %2557 = vmatpush2.msra.mxu0 %v2556
    %2558 = vmatprep.subr.mxu0 0.0
    %v2559 = vand.u32 %v138, 4294901760
    %v2560 = vsub.f32 %v138, %v2559
    %v2561 = vand.u32 %v2560, 4294901760
    %2562 = vmatpush2.msra.mxu0 %v2561
    %2563 = vmatprep.subr.mxu0 0.0
    %v2564 = vand.u32 %v137, 4294901760
    %v2565 = vsub.f32 %v137, %v2564
    %v2566 = vand.u32 %v2565, 4294901760
    %2567 = vmatpush2.msra.mxu0 %v2566
    %2568 = vmatprep.subr.mxu0 0.0
    %v2569 = vand.u32 %v136, 4294901760
    %v2570 = vsub.f32 %v136, %v2569
    %v2571 = vand.u32 %v2570, 4294901760
    %2572 = vmatpush2.msra.mxu0 %v2571
    %2573 = vmatprep.subr.mxu0 0.0
    %v2574 = vand.u32 %v135, 4294901760
    %v2575 = vsub.f32 %v135, %v2574
    %v2576 = vand.u32 %v2575, 4294901760
    %2577 = vmatpush2.msra.mxu0 %v2576
    %2578 = vmatprep.subr.mxu0 0.0
    %v2579 = vand.u32 %v134, 4294901760
    %v2580 = vsub.f32 %v134, %v2579
    %v2581 = vand.u32 %v2580, 4294901760
    %2582 = vmatpush2.msra.mxu0 %v2581
    %2583 = vmatprep.subr.mxu0 0.0
    %v2584 = vand.u32 %v133, 4294901760
    %v2585 = vsub.f32 %v133, %v2584
    %v2586 = vand.u32 %v2585, 4294901760
    %2587 = vmatpush2.msra.mxu0 %v2586
    %2588 = vmatprep.subr.mxu0 0.0
    %v2589 = vand.u32 %v132, 4294901760
    %v2590 = vsub.f32 %v132, %v2589
    %v2591 = vand.u32 %v2590, 4294901760
    %2592 = vmatpush2.msra.mxu0 %v2591
    %2593 = vmatprep.subr.mxu0 0.0
    %v2594 = vand.u32 %v131, 4294901760
    %v2595 = vsub.f32 %v131, %v2594
    %v2596 = vand.u32 %v2595, 4294901760
    %2597 = vmatpush2.msra.mxu0 %v2596
    %2598 = vmatprep.subr.mxu0 0.0
    %v2599 = vand.u32 %v130, 4294901760
    %v2600 = vsub.f32 %v130, %v2599
    %v2601 = vand.u32 %v2600, 4294901760
    %2602 = vmatpush2.msra.mxu0 %v2601
    %2603 = vmatprep.subr.mxu0 0.0
    %v2604 = vand.u32 %v129, 4294901760
    %v2605 = vsub.f32 %v129, %v2604
    %v2606 = vand.u32 %v2605, 4294901760
    %2607 = vmatpush2.msra.mxu0 %v2606
    %2608 = vmatprep.subr.mxu0 0.0
    %v2609 = vand.u32 %v128, 4294901760
    %v2610 = vsub.f32 %v128, %v2609
    %v2611 = vand.u32 %v2610, 4294901760
    %2612 = vmatpush2.msra.mxu0 %v2611
    %2613 = vmatprep.subr.mxu0 0.0
    %v2614 = vand.u32 %v127, 4294901760
    %v2615 = vsub.f32 %v127, %v2614
    %v2616 = vand.u32 %v2615, 4294901760
    %2617 = vmatpush2.msra.mxu0 %v2616
    %2618 = vmatprep.subr.mxu0 0.0
    %v2619 = vand.u32 %v126, 4294901760
    %v2620 = vsub.f32 %v126, %v2619
    %v2621 = vand.u32 %v2620, 4294901760
    %2622 = vmatpush2.msra.mxu0 %v2621
    %v2623 = vand.u32 %v45, 4294901760
    %2624 = vmatprep.mubr.f32.mxu0 %v2623
    %v2625 = vand.u32 %v44, 4294901760
    %2626 = vmatmul.mubr.f32.gmra.mxu0 %v2625
    %v2627 = vpop.f32.mrf.mxu0
    %v2628 = vadd.f32 %v2460, %v2627
    %v2629 = vpop.f32.mrf.mxu0
    %2630 = vdwg.mxu0
    %2631 = vmatprep.subr.mxu0 0.0
    %v2632 = vand.u32 %v125, 4294901760
    %2633 = vmatpush1.msra.mxu0 %v2632
    %2634 = vmatprep.subr.mxu0 0.0
    %v2635 = vand.u32 %v124, 4294901760
    %2636 = vmatpush1.msra.mxu0 %v2635
    %2637 = vmatprep.subr.mxu0 0.0
    %v2638 = vand.u32 %v123, 4294901760
    %2639 = vmatpush1.msra.mxu0 %v2638
    %2640 = vmatprep.subr.mxu0 0.0
    %v2641 = vand.u32 %v122, 4294901760
    %2642 = vmatpush1.msra.mxu0 %v2641
    %2643 = vmatprep.subr.mxu0 0.0
    %v2644 = vand.u32 %v121, 4294901760
    %2645 = vmatpush1.msra.mxu0 %v2644
    %2646 = vmatprep.subr.mxu0 0.0
    %v2647 = vand.u32 %v120, 4294901760
    %2648 = vmatpush1.msra.mxu0 %v2647
    %2649 = vmatprep.subr.mxu0 0.0
    %v2650 = vand.u32 %v119, 4294901760
    %2651 = vmatpush1.msra.mxu0 %v2650
    %2652 = vmatprep.subr.mxu0 0.0
    %v2653 = vand.u32 %v118, 4294901760
    %2654 = vmatpush1.msra.mxu0 %v2653
    %2655 = vmatprep.subr.mxu0 0.0
    %v2656 = vand.u32 %v117, 4294901760
    %2657 = vmatpush1.msra.mxu0 %v2656
    %2658 = vmatprep.subr.mxu0 0.0
    %v2659 = vand.u32 %v116, 4294901760
    %2660 = vmatpush1.msra.mxu0 %v2659
    %2661 = vmatprep.subr.mxu0 0.0
    %v2662 = vand.u32 %v115, 4294901760
    %2663 = vmatpush1.msra.mxu0 %v2662
    %2664 = vmatprep.subr.mxu0 0.0
    %v2665 = vand.u32 %v114, 4294901760
    %2666 = vmatpush1.msra.mxu0 %v2665
    %2667 = vmatprep.subr.mxu0 0.0
    %v2668 = vand.u32 %v113, 4294901760
    %2669 = vmatpush1.msra.mxu0 %v2668
    %2670 = vmatprep.subr.mxu0 0.0
    %v2671 = vand.u32 %v112, 4294901760
    %2672 = vmatpush1.msra.mxu0 %v2671
    %2673 = vmatprep.subr.mxu0 0.0
    %v2674 = vand.u32 %v111, 4294901760
    %2675 = vmatpush1.msra.mxu0 %v2674
    %2676 = vmatprep.subr.mxu0 0.0
    %v2677 = vand.u32 %v110, 4294901760
    %2678 = vmatpush1.msra.mxu0 %v2677
    %2679 = vmatprep.subr.mxu0 0.0
    %v2680 = vand.u32 %v141, 4294901760
    %2681 = vmatpush2.msra.mxu0 %v2680
    %2682 = vmatprep.subr.mxu0 0.0
    %v2683 = vand.u32 %v140, 4294901760
    %2684 = vmatpush2.msra.mxu0 %v2683
    %2685 = vmatprep.subr.mxu0 0.0
    %v2686 = vand.u32 %v139, 4294901760
    %2687 = vmatpush2.msra.mxu0 %v2686
    %2688 = vmatprep.subr.mxu0 0.0
    %v2689 = vand.u32 %v138, 4294901760
    %2690 = vmatpush2.msra.mxu0 %v2689
    %2691 = vmatprep.subr.mxu0 0.0
    %v2692 = vand.u32 %v137, 4294901760
    %2693 = vmatpush2.msra.mxu0 %v2692
    %2694 = vmatprep.subr.mxu0 0.0
    %v2695 = vand.u32 %v136, 4294901760
    %2696 = vmatpush2.msra.mxu0 %v2695
    %2697 = vmatprep.subr.mxu0 0.0
    %v2698 = vand.u32 %v135, 4294901760
    %2699 = vmatpush2.msra.mxu0 %v2698
    %2700 = vmatprep.subr.mxu0 0.0
    %v2701 = vand.u32 %v134, 4294901760
    %2702 = vmatpush2.msra.mxu0 %v2701
    %2703 = vmatprep.subr.mxu0 0.0
    %v2704 = vand.u32 %v133, 4294901760
    %2705 = vmatpush2.msra.mxu0 %v2704
    %2706 = vmatprep.subr.mxu0 0.0
    %v2707 = vand.u32 %v132, 4294901760
    %2708 = vmatpush2.msra.mxu0 %v2707
    %2709 = vmatprep.subr.mxu0 0.0
    %v2710 = vand.u32 %v131, 4294901760
    %2711 = vmatpush2.msra.mxu0 %v2710
    %2712 = vmatprep.subr.mxu0 0.0
    %v2713 = vand.u32 %v130, 4294901760
    %2714 = vmatpush2.msra.mxu0 %v2713
    %2715 = vmatprep.subr.mxu0 0.0
    %v2716 = vand.u32 %v129, 4294901760
    %2717 = vmatpush2.msra.mxu0 %v2716
    %2718 = vmatprep.subr.mxu0 0.0
    %v2719 = vand.u32 %v128, 4294901760
    %2720 = vmatpush2.msra.mxu0 %v2719
    %2721 = vmatprep.subr.mxu0 0.0
    %v2722 = vand.u32 %v127, 4294901760
    %2723 = vmatpush2.msra.mxu0 %v2722
    %2724 = vmatprep.subr.mxu0 0.0
    %v2725 = vand.u32 %v126, 4294901760
    %2726 = vmatpush2.msra.mxu0 %v2725
    %v2727 = vand.u32 %v45, 4294901760
    %2728 = vmatprep.mubr.f32.mxu0 %v2727
    %v2729 = vand.u32 %v44, 4294901760
    %2730 = vmatmul.mubr.f32.gmra.mxu0 %v2729
    %v2731 = vpop.f32.mrf.mxu0
    %v2732 = vadd.f32 %v2628, %v2731
    %v2733 = vpop.f32.mrf.mxu0
    %2734 = vdwg.mxu0
    %2735 = vst [vmem:[%s3] sm:$0xff] %v2732
    // Predicated region
    $region22: #{mlp_forward.1} parent=1 // pred_check
      _
    $region23: #{mlp_forward.1} parent=1 // pred_check_branch
      %2737 = sbr.rel (0) target = $region25
    $region24: #{mlp_forward.1} parent=1 // pred_region
      _
    $region25: #{mlp_forward.1} parent=1 // pred_fallthru
      _
    // Predicated region
    $region26: #{mlp_forward.1} parent=1 // pred_check
      _
    $region27: #{mlp_forward.1} parent=1 // pred_check_branch
      %2739 = sbr.rel (0) target = $region29
    $region28: #{mlp_forward.1} parent=1 // pred_region
      _
    $region29: #{mlp_forward.1} parent=1 // pred_fallthru
      _
    %2740 = vsyncpa [#allocation3], 1
    %2741 = vsyncpa [#allocation5], 1

</llo_original>
